<compile_context>
chip_gen: v7x
topology: tpu7x:2x2x1
jax: 0.10.0
libtpu: 0.0.40
codegen_flags: <defaults>
</compile_context>

<pallas_src>
import numpy as np
import jax
import jax.numpy as jnp
from jax import lax
from jax.experimental import pallas as pl
from jax.experimental.pallas import tpu as pltpu

NUM_HEADS = 8
DIM_FF = 512
LN_EPS = 1e-5
NEG_INF = -1e30


def _encoder_kernel(x_ref, mask_ref, hsel_ref,
                    wq_ref, bq_ref, wk_ref, bk_ref, wv_ref, bv_ref,
                    wo_ref, bo_ref,
                    g1_ref, beta1_ref,
                    w1_ref, b1_ref, w2_ref, b2_ref,
                    g2_ref, beta2_ref,
                    out_ref):
    G, T, D = x_ref.shape                      # G batch elements per grid step
    HT = mask_ref.shape[0]                     # H * T
    H = HT // T

    # Flatten the per-step batch into a (G*T, D) row slab (sublane-aligned
    # concat: T = 16 rows = 2 sublane tiles per element).
    if G == 1:
        x = x_ref[0].astype(jnp.float32)
    else:
        x = jnp.concatenate([x_ref[g] for g in range(G)], axis=0).astype(jnp.float32)
    xb = x.astype(jnp.bfloat16)

    # ---- QKV projections (1/sqrt(head_dim) already folded into wq/bq) ----
    q = jnp.dot(xb, wq_ref[...], preferred_element_type=jnp.float32) + bq_ref[...]
    k = jnp.dot(xb, wk_ref[...], preferred_element_type=jnp.float32) + bk_ref[...]
    v = jnp.dot(xb, wv_ref[...], preferred_element_type=jnp.float32) + bv_ref[...]

    hsel = hsel_ref[...]                       # (HT, D) 0/1 head-channel selector
    mask = mask_ref[...]                       # (HT, T) additive window mask

    attn_rows = []
    for g in range(G):                         # static unroll (G <= 2)
        qg = q[g * T:(g + 1) * T]              # (T, D) static sublane-aligned slices
        kg = k[g * T:(g + 1) * T]
        vg = v[g * T:(g + 1) * T]

        # Stack q over heads and keep only each head's own channels; k stays
        # untiled -> scores land directly as (HT, T).
        q_s = (jnp.concatenate([qg] * H, axis=0) * hsel).astype(jnp.bfloat16)
        s = lax.dot_general(q_s, kg.astype(jnp.bfloat16),
                            (((1,), (1,)), ((), ())),
                            preferred_element_type=jnp.float32)      # (HT, T)
        s = s + mask
        s = s - jnp.max(s, axis=-1, keepdims=True)
        p = jnp.exp(s)                                               # f32
        inv = pl.reciprocal(jnp.sum(p, axis=-1, keepdims=True), approx=True)

        o = jnp.dot(p.astype(jnp.bfloat16), vg.astype(jnp.bfloat16),
                    preferred_element_type=jnp.float32)              # (HT, D)
        o = o * (inv * hsel)      # normalize + keep own head's channels only

        # Balanced-tree reassembly of the head blocks (disjoint channels).
        parts = [o[h * T:(h + 1) * T] for h in range(H)]
        while len(parts) > 1:
            parts = [parts[i] + parts[i + 1] for i in range(0, len(parts), 2)]
        attn_rows.append(parts[0])                                   # (T, D)

    attn = attn_rows[0] if G == 1 else jnp.concatenate(attn_rows, axis=0)
    attn = jnp.dot(attn.astype(jnp.bfloat16), wo_ref[...],
                   preferred_element_type=jnp.float32) + bo_ref[...]

    # ---- residual + LayerNorm1 (dropout1 is identity in eval mode) ----
    src = x + attn
    mu = jnp.mean(src, axis=-1, keepdims=True)
    var = jnp.mean((src - mu) ** 2, axis=-1, keepdims=True)
    src = (src - mu) * lax.rsqrt(var + LN_EPS) * g1_ref[...] + beta1_ref[...]

    # ---- feed-forward (dropout is identity in eval mode) ----
    h1 = jnp.dot(src.astype(jnp.bfloat16), w1_ref[...],
                 preferred_element_type=jnp.float32) + b1_ref[...]
    h1 = jnp.maximum(h1, 0.0)
    ffn = jnp.dot(h1.astype(jnp.bfloat16), w2_ref[...],
                  preferred_element_type=jnp.float32) + b2_ref[...]

    # ---- residual + LayerNorm2 ----
    src2 = src + ffn
    mu2 = jnp.mean(src2, axis=-1, keepdims=True)
    var2 = jnp.mean((src2 - mu2) ** 2, axis=-1, keepdims=True)
    out = (src2 - mu2) * lax.rsqrt(var2 + LN_EPS) * g2_ref[...] + beta2_ref[...]

    for g in range(G):
        out_ref[g] = out[g * T:(g + 1) * T].astype(out_ref.dtype)


def _tensorcores_per_chip():
    # v7x has 2 TensorCores per chip -> keep grid=(B,) "parallel"; v5e/v6e are
    # single-TC -> fuse the whole batch into one grid step.
    try:
        kind = jax.devices()[0].device_kind.lower()
        if "v7" in kind:
            return 2
    except Exception:
        pass
    return 1


def local_temporal_encoder(x, kp, *, batch_per_step=None):
    B, T, D = x.shape
    if batch_per_step is None:
        batch_per_step = 1 if _tensorcores_per_chip() > 1 else B
    G = batch_per_step
    assert B % G == 0, (B, G)

    operands = [
        kp["win_mask"], kp["head_sel"],
        kp["wq_t"], kp["bq"], kp["wk_t"], kp["bk"], kp["wv_t"], kp["bv"],
        kp["wo_t"], kp["bo"],
        kp["ln1_g"], kp["ln1_b"],
        kp["w1_t"], kp["b1"], kp["w2_t"], kp["b2"],
        kp["ln2_g"], kp["ln2_b"],
    ]

    def const_spec(a):
        nd = a.ndim
        return pl.BlockSpec(a.shape, lambda b, nd=nd: (0,) * nd)

    in_specs = ([pl.BlockSpec((G, T, D), lambda b: (b, 0, 0))]
                + [const_spec(a) for a in operands])

    grid_spec = pltpu.PrefetchScalarGridSpec(
        num_scalar_prefetch=0,
        grid=(B // G,),
        in_specs=in_specs,
        out_specs=pl.BlockSpec((G, T, D), lambda b: (b, 0, 0)),
    )

    H = NUM_HEADS
    flops = B * (3 * 2 * T * D * D                 # QKV projections
                 + 2 * (H * T) * T * D             # stacked score matmul
                 + 2 * (H * T) * T * D             # PV matmul
                 + 2 * T * D * D                   # output projection
                 + 2 * 2 * T * D * DIM_FF)         # FFN
    param_bytes = sum(int(a.size) * a.dtype.itemsize for a in operands)
    cost = pl.CostEstimate(
        flops=int(flops),
        transcendentals=int(B * (H * T) * T),
        bytes_accessed=int(2 * B * T * D * 4 + param_bytes),
    )

    return pl.pallas_call(
        _encoder_kernel,
        out_shape=jax.ShapeDtypeStruct((B, T, D), x.dtype),
        grid_spec=grid_spec,
        compiler_params=pltpu.CompilerParams(
            dimension_semantics=("parallel",)),
        cost_estimate=cost,
    )(x, *operands)


def make_window_mask(num_heads, temporal_scale, window_size):
    # Exact port of GlobalLocalAttention._mask_matrix (True = masked out).
    m = np.ones((num_heads, temporal_scale, temporal_scale), dtype=bool)
    local_len = 8
    if local_len > 0:
        for i in range(min(local_len, num_heads)):
            for j in range(temporal_scale):
                for kk in range(window_size):
                    idx = min(max(j - window_size // 2 + kk, 0),
                              temporal_scale - 1)
                    m[i, j, idx] = False
        if local_len < num_heads:
            m[local_len:] = False
    else:
        m[:] = False
    return m


def init_raw_params(key, input_dim):
    # PyTorch-orientation (out_features, in_features) weights + flat biases.
    D = input_dim
    ks = jax.random.split(key, 12)

    def w(k, shape, s=0.05):
        return jax.random.normal(k, shape, jnp.float32) * s

    return dict(
        wq=w(ks[0], (D, D)), wk=w(ks[1], (D, D)), wv=w(ks[2], (D, D)),
        wo=w(ks[3], (D, D)),
        bq=w(ks[4], (D,)), bk=w(ks[5], (D,)), bv=w(ks[6], (D,)),
        bo=w(ks[7], (D,)),
        w1=w(ks[8], (DIM_FF, D)), b1=w(ks[9], (DIM_FF,)),
        w2=w(ks[10], (D, DIM_FF)), b2=w(ks[11], (D,)),
        ln1_g=jnp.ones((D,), jnp.float32), ln1_b=jnp.zeros((D,), jnp.float32),
        ln2_g=jnp.ones((D,), jnp.float32), ln2_b=jnp.zeros((D,), jnp.float32),
    )


def prepare_kernel_params(raw, temporal_scale, window_size):
    # One-time parameter transform (NOT per-call work):
    #  - transpose weights to (in, out) and cast them to bf16 (MXU-native)
    #  - fold 1/sqrt(head_dim) into Wq / bq
    #  - precompute the stacked (H*T, T) additive window mask and the
    #    (H*T, D) head-channel selector (both f32; used in VPU math)
    D = raw["wq"].shape[0]
    H = NUM_HEADS
    T = temporal_scale
    hd = D // H
    scale = float(hd) ** -0.5

    win = make_window_mask(H, T, window_size)                       # (H, T, T)
    win_mask = np.where(win.reshape(H * T, T), NEG_INF, 0.0).astype(np.float32)

    hsel = np.zeros((H * T, D), np.float32)
    for h in range(H):
        hsel[h * T:(h + 1) * T, h * hd:(h + 1) * hd] = 1.0

    def r2(v):
        return jnp.asarray(v, jnp.float32).reshape(1, -1)

    def wt(v):
        return jnp.asarray(v, jnp.float32).T.astype(jnp.bfloat16)

    return dict(
        win_mask=jnp.asarray(win_mask), head_sel=jnp.asarray(hsel),
        wq_t=wt(raw["wq"] * scale), bq=r2(raw["bq"] * scale),
        wk_t=wt(raw["wk"]), bk=r2(raw["bk"]),
        wv_t=wt(raw["wv"]), bv=r2(raw["bv"]),
        wo_t=wt(raw["wo"]), bo=r2(raw["bo"]),
        ln1_g=r2(raw["ln1_g"]), ln1_b=r2(raw["ln1_b"]),
        w1_t=wt(raw["w1"]), b1=r2(raw["b1"]),
        w2_t=wt(raw["w2"]), b2=r2(raw["b2"]),
        ln2_g=r2(raw["ln2_g"]), ln2_b=r2(raw["ln2_b"]),
    )


def reference_forward(x, raw, window_size):
    # Pure-JAX f32 reference mirroring the PyTorch forward (eval mode).
    B, T, D = x.shape
    H = NUM_HEADS
    hd = D // H
    q = x @ raw["wq"].T + raw["bq"]
    k = x @ raw["wk"].T + raw["bk"]
    v = x @ raw["wv"].T + raw["bv"]
    q = q * (float(hd) ** -0.5)
    qh = q.reshape(B, T, H, hd).transpose(0, 2, 1, 3)
    kh = k.reshape(B, T, H, hd).transpose(0, 2, 1, 3)
    vh = v.reshape(B, T, H, hd).transpose(0, 2, 1, 3)
    mask = jnp.asarray(make_window_mask(H, T, window_size))
    s = jnp.einsum("bhqd,bhkd->bhqk", qh, kh) + jnp.where(mask, NEG_INF, 0.0)[None]
    p = jax.nn.softmax(s, axis=-1)
    o = jnp.einsum("bhqk,bhkd->bhqd", p, vh).transpose(0, 2, 1, 3).reshape(B, T, D)
    o = o @ raw["wo"].T + raw["bo"]

    def ln(z, g, b):
        mu = z.mean(-1, keepdims=True)
        var = ((z - mu) ** 2).mean(-1, keepdims=True)
        return (z - mu) / jnp.sqrt(var + LN_EPS) * g + b

    src = ln(x + o, raw["ln1_g"], raw["ln1_b"])
    ffn = jnp.maximum(src @ raw["w1"].T + raw["b1"], 0.0) @ raw["w2"].T + raw["b2"]
    return ln(src + ffn, raw["ln2_g"], raw["ln2_b"])


if __name__ == "__main__":
    # input_dim=32, temporal_scale=16 (sequence length), window_size=5, batch=2
    B, T, D = 2, 16, 32
    window_size = 5

    key = jax.random.PRNGKey(0)
    kx, kparam = jax.random.split(key)
    x = jax.random.normal(kx, (B, T, D), jnp.float32)

    raw = init_raw_params(kparam, D)
    kp = prepare_kernel_params(raw, T, window_size)   # one-time transform
    ref = reference_forward(x, raw, window_size)

    # 2e-2 tolerance accounts for bf16 matmul operands (f32 accumulation) and
    # the EUP approximate reciprocal in the softmax; structural errors would
    # be orders of magnitude larger.
    ATOL = RTOL = 2e-2

    # Device-appropriate grid (fused batch on single-TC, per-batch on v7x).
    out = jax.block_until_ready(local_temporal_encoder(x, kp))
    assert out.shape == (B, T, D)
    assert jnp.allclose(out, ref, atol=ATOL, rtol=RTOL)

    # Exercise both grid layouts explicitly so either generation path is known-good.
    out_fused = jax.block_until_ready(local_temporal_encoder(x, kp, batch_per_step=B))
    out_split = jax.block_until_ready(local_temporal_encoder(x, kp, batch_per_step=1))
    assert jnp.allclose(out_fused, ref, atol=ATOL, rtol=RTOL)
    assert jnp.allclose(out_split, ref, atol=ATOL, rtol=RTOL)

    print("KERNEL_OK")
</pallas_src>

<mosaic_0001>
module attributes {stable_mosaic.version = 11 : i64} {
  func.func @_encoder_kernel(%arg0: i32, %arg1: memref<2x16x32xf32, #tpu.memory_space<vmem>>, %arg2: memref<128x16xf32, #tpu.memory_space<vmem>>, %arg3: memref<128x32xf32, #tpu.memory_space<vmem>>, %arg4: memref<32x32xbf16, #tpu.memory_space<vmem>>, %arg5: memref<1x32xf32, #tpu.memory_space<vmem>>, %arg6: memref<32x32xbf16, #tpu.memory_space<vmem>>, %arg7: memref<1x32xf32, #tpu.memory_space<vmem>>, %arg8: memref<32x32xbf16, #tpu.memory_space<vmem>>, %arg9: memref<1x32xf32, #tpu.memory_space<vmem>>, %arg10: memref<32x32xbf16, #tpu.memory_space<vmem>>, %arg11: memref<1x32xf32, #tpu.memory_space<vmem>>, %arg12: memref<1x32xf32, #tpu.memory_space<vmem>>, %arg13: memref<1x32xf32, #tpu.memory_space<vmem>>, %arg14: memref<32x512xbf16, #tpu.memory_space<vmem>>, %arg15: memref<1x512xf32, #tpu.memory_space<vmem>>, %arg16: memref<512x32xbf16, #tpu.memory_space<vmem>>, %arg17: memref<1x32xf32, #tpu.memory_space<vmem>>, %arg18: memref<1x32xf32, #tpu.memory_space<vmem>>, %arg19: memref<1x32xf32, #tpu.memory_space<vmem>>, %arg20: memref<2x16x32xf32, #tpu.memory_space<vmem>>) attributes {dimension_semantics = [#tpu.dimension_semantics<parallel>], iteration_bounds = array<i64: 1>, scalar_prefetch = 0 : i64, scratch_operands = 0 : i64, tpu.core_type = #tpu.core_type<tc>, window_params = [{transform_indices = @transform_0, window_bounds = array<i64: 2, 16, 32>}, {pipeline_mode = #tpu.pipeline_mode<synchronous>, transform_indices = @transform_1, window_bounds = array<i64: 128, 16>}, {pipeline_mode = #tpu.pipeline_mode<synchronous>, transform_indices = @transform_2, window_bounds = array<i64: 128, 32>}, {pipeline_mode = #tpu.pipeline_mode<synchronous>, transform_indices = @transform_3, window_bounds = array<i64: 32, 32>}, {pipeline_mode = #tpu.pipeline_mode<synchronous>, transform_indices = @transform_4, window_bounds = array<i64: 1, 32>}, {pipeline_mode = #tpu.pipeline_mode<synchronous>, transform_indices = @transform_5, window_bounds = array<i64: 32, 32>}, {pipeline_mode = #tpu.pipeline_mode<synchronous>, transform_indices = @transform_6, window_bounds = array<i64: 1, 32>}, {pipeline_mode = #tpu.pipeline_mode<synchronous>, transform_indices = @transform_7, window_bounds = array<i64: 32, 32>}, {pipeline_mode = #tpu.pipeline_mode<synchronous>, transform_indices = @transform_8, window_bounds = array<i64: 1, 32>}, {pipeline_mode = #tpu.pipeline_mode<synchronous>, transform_indices = @transform_9, window_bounds = array<i64: 32, 32>}, {pipeline_mode = #tpu.pipeline_mode<synchronous>, transform_indices = @transform_10, window_bounds = array<i64: 1, 32>}, {pipeline_mode = #tpu.pipeline_mode<synchronous>, transform_indices = @transform_11, window_bounds = array<i64: 1, 32>}, {pipeline_mode = #tpu.pipeline_mode<synchronous>, transform_indices = @transform_12, window_bounds = array<i64: 1, 32>}, {pipeline_mode = #tpu.pipeline_mode<synchronous>, transform_indices = @transform_13, window_bounds = array<i64: 32, 512>}, {pipeline_mode = #tpu.pipeline_mode<synchronous>, transform_indices = @transform_14, window_bounds = array<i64: 1, 512>}, {pipeline_mode = #tpu.pipeline_mode<synchronous>, transform_indices = @transform_15, window_bounds = array<i64: 512, 32>}, {pipeline_mode = #tpu.pipeline_mode<synchronous>, transform_indices = @transform_16, window_bounds = array<i64: 1, 32>}, {pipeline_mode = #tpu.pipeline_mode<synchronous>, transform_indices = @transform_17, window_bounds = array<i64: 1, 32>}, {pipeline_mode = #tpu.pipeline_mode<synchronous>, transform_indices = @transform_18, window_bounds = array<i64: 1, 32>}, {transform_indices = @transform_19, window_bounds = array<i64: 2, 16, 32>}]} {
    %c0 = arith.constant 0 : index
    %c0_0 = arith.constant 0 : index
    %c0_1 = arith.constant 0 : index
    %0 = vector.load %arg1[%c0, %c0_0, %c0_1] : memref<2x16x32xf32, #tpu.memory_space<vmem>>, vector<1x16x32xf32>
    %1 = vector.shape_cast %0 : vector<1x16x32xf32> to vector<16x32xf32>
    %c1 = arith.constant 1 : index
    %c0_2 = arith.constant 0 : index
    %c0_3 = arith.constant 0 : index
    %2 = vector.load %arg1[%c1, %c0_2, %c0_3] : memref<2x16x32xf32, #tpu.memory_space<vmem>>, vector<1x16x32xf32>
    %3 = vector.shape_cast %2 : vector<1x16x32xf32> to vector<16x32xf32>
    %4 = tpu.concatenate %1, %3 in 0 : vector<16x32xf32>, vector<16x32xf32> -> vector<32x32xf32>
    %5 = arith.truncf %4 : vector<32x32xf32> to vector<32x32xbf16>
    %c0_4 = arith.constant 0 : index
    %c0_5 = arith.constant 0 : index
    %6 = vector.load %arg4[%c0_4, %c0_5] : memref<32x32xbf16, #tpu.memory_space<vmem>>, vector<32x32xbf16>
    %cst = arith.constant dense<0.000000e+00> : vector<32x32xf32>
    %7 = tpu.matmul %5, %6, %cst {dimension_numbers = #tpu.dot_dimension_numbers<[1], [0], [0], [1], [0, 0, 1, 1], [], []>} : vector<32x32xbf16>, vector<32x32xbf16>, vector<32x32xf32> -> vector<32x32xf32>
    %c0_6 = arith.constant 0 : index
    %c0_7 = arith.constant 0 : index
    %8 = vector.load %arg5[%c0_6, %c0_7] : memref<1x32xf32, #tpu.memory_space<vmem>>, vector<1x32xf32>
    %9 = vector.broadcast %8 : vector<1x32xf32> to vector<32x32xf32>
    %10 = arith.addf %7, %9 : vector<32x32xf32>
    %c0_8 = arith.constant 0 : index
    %c0_9 = arith.constant 0 : index
    %11 = vector.load %arg6[%c0_8, %c0_9] : memref<32x32xbf16, #tpu.memory_space<vmem>>, vector<32x32xbf16>
    %cst_10 = arith.constant dense<0.000000e+00> : vector<32x32xf32>
    %12 = tpu.matmul %5, %11, %cst_10 {dimension_numbers = #tpu.dot_dimension_numbers<[1], [0], [0], [1], [0, 0, 1, 1], [], []>} : vector<32x32xbf16>, vector<32x32xbf16>, vector<32x32xf32> -> vector<32x32xf32>
    %c0_11 = arith.constant 0 : index
    %c0_12 = arith.constant 0 : index
    %13 = vector.load %arg7[%c0_11, %c0_12] : memref<1x32xf32, #tpu.memory_space<vmem>>, vector<1x32xf32>
    %14 = vector.broadcast %13 : vector<1x32xf32> to vector<32x32xf32>
    %15 = arith.addf %12, %14 : vector<32x32xf32>
    %c0_13 = arith.constant 0 : index
    %c0_14 = arith.constant 0 : index
    %16 = vector.load %arg8[%c0_13, %c0_14] : memref<32x32xbf16, #tpu.memory_space<vmem>>, vector<32x32xbf16>
    %cst_15 = arith.constant dense<0.000000e+00> : vector<32x32xf32>
    %17 = tpu.matmul %5, %16, %cst_15 {dimension_numbers = #tpu.dot_dimension_numbers<[1], [0], [0], [1], [0, 0, 1, 1], [], []>} : vector<32x32xbf16>, vector<32x32xbf16>, vector<32x32xf32> -> vector<32x32xf32>
    %c0_16 = arith.constant 0 : index
    %c0_17 = arith.constant 0 : index
    %18 = vector.load %arg9[%c0_16, %c0_17] : memref<1x32xf32, #tpu.memory_space<vmem>>, vector<1x32xf32>
    %19 = vector.broadcast %18 : vector<1x32xf32> to vector<32x32xf32>
    %20 = arith.addf %17, %19 : vector<32x32xf32>
    %c0_18 = arith.constant 0 : index
    %c0_19 = arith.constant 0 : index
    %21 = vector.load %arg3[%c0_18, %c0_19] : memref<128x32xf32, #tpu.memory_space<vmem>>, vector<128x32xf32>
    %c0_20 = arith.constant 0 : index
    %c0_21 = arith.constant 0 : index
    %22 = vector.load %arg2[%c0_20, %c0_21] : memref<128x16xf32, #tpu.memory_space<vmem>>, vector<128x16xf32>
    %23 = vector.extract_strided_slice %10 {offsets = [0, 0], sizes = [16, 32], strides = [1, 1]} : vector<32x32xf32> to vector<16x32xf32>
    %24 = vector.extract_strided_slice %15 {offsets = [0, 0], sizes = [16, 32], strides = [1, 1]} : vector<32x32xf32> to vector<16x32xf32>
    %25 = vector.extract_strided_slice %20 {offsets = [0, 0], sizes = [16, 32], strides = [1, 1]} : vector<32x32xf32> to vector<16x32xf32>
    %26 = tpu.concatenate %23, %23, %23, %23, %23, %23, %23, %23 in 0 : vector<16x32xf32>, vector<16x32xf32>, vector<16x32xf32>, vector<16x32xf32>, vector<16x32xf32>, vector<16x32xf32>, vector<16x32xf32>, vector<16x32xf32> -> vector<128x32xf32>
    %27 = arith.mulf %26, %21 : vector<128x32xf32>
    %28 = arith.truncf %27 : vector<128x32xf32> to vector<128x32xbf16>
    %29 = arith.truncf %24 : vector<16x32xf32> to vector<16x32xbf16>
    %cst_22 = arith.constant dense<0.000000e+00> : vector<128x16xf32>
    %30 = tpu.matmul %28, %29, %cst_22 {dimension_numbers = #tpu.dot_dimension_numbers<[1], [1], [0], [0], [0, 0, 1, 0], [], []>} : vector<128x32xbf16>, vector<16x32xbf16>, vector<128x16xf32> -> vector<128x16xf32>
    %31 = arith.addf %30, %22 : vector<128x16xf32>
    %cst_23 = arith.constant dense<0xFF800000> : vector<128xf32>
    %32 = vector.multi_reduction <maximumf>, %31, %cst_23 [1] : vector<128x16xf32> to vector<128xf32>
    %33 = vector.shape_cast %32 : vector<128xf32> to vector<128x1xf32>
    %34 = vector.broadcast %33 : vector<128x1xf32> to vector<128x16xf32>
    %35 = arith.subf %31, %34 : vector<128x16xf32>
    %36 = math.exp %35 : vector<128x16xf32>
    %cst_24 = arith.constant dense<0.000000e+00> : vector<128xf32>
    %37 = vector.multi_reduction <add>, %36, %cst_24 [1] : vector<128x16xf32> to vector<128xf32>
    %38 = vector.shape_cast %37 : vector<128xf32> to vector<128x1xf32>
    %39 = tpu.reciprocal %38 {approx = true} : vector<128x1xf32> -> vector<128x1xf32>
    %40 = arith.truncf %36 : vector<128x16xf32> to vector<128x16xbf16>
    %41 = arith.truncf %25 : vector<16x32xf32> to vector<16x32xbf16>
    %cst_25 = arith.constant dense<0.000000e+00> : vector<128x32xf32>
    %42 = tpu.matmul %40, %41, %cst_25 {dimension_numbers = #tpu.dot_dimension_numbers<[1], [0], [0], [1], [0, 0, 1, 1], [], []>} : vector<128x16xbf16>, vector<16x32xbf16>, vector<128x32xf32> -> vector<128x32xf32>
    %43 = vector.broadcast %39 : vector<128x1xf32> to vector<128x32xf32>
    %44 = arith.mulf %43, %21 : vector<128x32xf32>
    %45 = arith.mulf %42, %44 : vector<128x32xf32>
    %46 = vector.extract_strided_slice %45 {offsets = [0, 0], sizes = [16, 32], strides = [1, 1]} : vector<128x32xf32> to vector<16x32xf32>
    %47 = vector.extract_strided_slice %45 {offsets = [16, 0], sizes = [16, 32], strides = [1, 1]} : vector<128x32xf32> to vector<16x32xf32>
    %48 = vector.extract_strided_slice %45 {offsets = [32, 0], sizes = [16, 32], strides = [1, 1]} : vector<128x32xf32> to vector<16x32xf32>
    %49 = vector.extract_strided_slice %45 {offsets = [48, 0], sizes = [16, 32], strides = [1, 1]} : vector<128x32xf32> to vector<16x32xf32>
    %50 = vector.extract_strided_slice %45 {offsets = [64, 0], sizes = [16, 32], strides = [1, 1]} : vector<128x32xf32> to vector<16x32xf32>
    %51 = vector.extract_strided_slice %45 {offsets = [80, 0], sizes = [16, 32], strides = [1, 1]} : vector<128x32xf32> to vector<16x32xf32>
    %52 = vector.extract_strided_slice %45 {offsets = [96, 0], sizes = [16, 32], strides = [1, 1]} : vector<128x32xf32> to vector<16x32xf32>
    %53 = vector.extract_strided_slice %45 {offsets = [112, 0], sizes = [16, 32], strides = [1, 1]} : vector<128x32xf32> to vector<16x32xf32>
    %54 = arith.addf %46, %47 : vector<16x32xf32>
    %55 = arith.addf %48, %49 : vector<16x32xf32>
    %56 = arith.addf %50, %51 : vector<16x32xf32>
    %57 = arith.addf %52, %53 : vector<16x32xf32>
    %58 = arith.addf %54, %55 : vector<16x32xf32>
    %59 = arith.addf %56, %57 : vector<16x32xf32>
    %60 = arith.addf %58, %59 : vector<16x32xf32>
    %61 = vector.extract_strided_slice %10 {offsets = [16, 0], sizes = [16, 32], strides = [1, 1]} : vector<32x32xf32> to vector<16x32xf32>
    %62 = vector.extract_strided_slice %15 {offsets = [16, 0], sizes = [16, 32], strides = [1, 1]} : vector<32x32xf32> to vector<16x32xf32>
    %63 = vector.extract_strided_slice %20 {offsets = [16, 0], sizes = [16, 32], strides = [1, 1]} : vector<32x32xf32> to vector<16x32xf32>
    %64 = tpu.concatenate %61, %61, %61, %61, %61, %61, %61, %61 in 0 : vector<16x32xf32>, vector<16x32xf32>, vector<16x32xf32>, vector<16x32xf32>, vector<16x32xf32>, vector<16x32xf32>, vector<16x32xf32>, vector<16x32xf32> -> vector<128x32xf32>
    %65 = arith.mulf %64, %21 : vector<128x32xf32>
    %66 = arith.truncf %65 : vector<128x32xf32> to vector<128x32xbf16>
    %67 = arith.truncf %62 : vector<16x32xf32> to vector<16x32xbf16>
    %cst_26 = arith.constant dense<0.000000e+00> : vector<128x16xf32>
    %68 = tpu.matmul %66, %67, %cst_26 {dimension_numbers = #tpu.dot_dimension_numbers<[1], [1], [0], [0], [0, 0, 1, 0], [], []>} : vector<128x32xbf16>, vector<16x32xbf16>, vector<128x16xf32> -> vector<128x16xf32>
    %69 = arith.addf %68, %22 : vector<128x16xf32>
    %cst_27 = arith.constant dense<0xFF800000> : vector<128xf32>
    %70 = vector.multi_reduction <maximumf>, %69, %cst_27 [1] : vector<128x16xf32> to vector<128xf32>
    %71 = vector.shape_cast %70 : vector<128xf32> to vector<128x1xf32>
    %72 = vector.broadcast %71 : vector<128x1xf32> to vector<128x16xf32>
    %73 = arith.subf %69, %72 : vector<128x16xf32>
    %74 = math.exp %73 : vector<128x16xf32>
    %cst_28 = arith.constant dense<0.000000e+00> : vector<128xf32>
    %75 = vector.multi_reduction <add>, %74, %cst_28 [1] : vector<128x16xf32> to vector<128xf32>
    %76 = vector.shape_cast %75 : vector<128xf32> to vector<128x1xf32>
    %77 = tpu.reciprocal %76 {approx = true} : vector<128x1xf32> -> vector<128x1xf32>
    %78 = arith.truncf %74 : vector<128x16xf32> to vector<128x16xbf16>
    %79 = arith.truncf %63 : vector<16x32xf32> to vector<16x32xbf16>
    %cst_29 = arith.constant dense<0.000000e+00> : vector<128x32xf32>
    %80 = tpu.matmul %78, %79, %cst_29 {dimension_numbers = #tpu.dot_dimension_numbers<[1], [0], [0], [1], [0, 0, 1, 1], [], []>} : vector<128x16xbf16>, vector<16x32xbf16>, vector<128x32xf32> -> vector<128x32xf32>
    %81 = vector.broadcast %77 : vector<128x1xf32> to vector<128x32xf32>
    %82 = arith.mulf %81, %21 : vector<128x32xf32>
    %83 = arith.mulf %80, %82 : vector<128x32xf32>
    %84 = vector.extract_strided_slice %83 {offsets = [0, 0], sizes = [16, 32], strides = [1, 1]} : vector<128x32xf32> to vector<16x32xf32>
    %85 = vector.extract_strided_slice %83 {offsets = [16, 0], sizes = [16, 32], strides = [1, 1]} : vector<128x32xf32> to vector<16x32xf32>
    %86 = vector.extract_strided_slice %83 {offsets = [32, 0], sizes = [16, 32], strides = [1, 1]} : vector<128x32xf32> to vector<16x32xf32>
    %87 = vector.extract_strided_slice %83 {offsets = [48, 0], sizes = [16, 32], strides = [1, 1]} : vector<128x32xf32> to vector<16x32xf32>
    %88 = vector.extract_strided_slice %83 {offsets = [64, 0], sizes = [16, 32], strides = [1, 1]} : vector<128x32xf32> to vector<16x32xf32>
    %89 = vector.extract_strided_slice %83 {offsets = [80, 0], sizes = [16, 32], strides = [1, 1]} : vector<128x32xf32> to vector<16x32xf32>
    %90 = vector.extract_strided_slice %83 {offsets = [96, 0], sizes = [16, 32], strides = [1, 1]} : vector<128x32xf32> to vector<16x32xf32>
    %91 = vector.extract_strided_slice %83 {offsets = [112, 0], sizes = [16, 32], strides = [1, 1]} : vector<128x32xf32> to vector<16x32xf32>
    %92 = arith.addf %84, %85 : vector<16x32xf32>
    %93 = arith.addf %86, %87 : vector<16x32xf32>
    %94 = arith.addf %88, %89 : vector<16x32xf32>
    %95 = arith.addf %90, %91 : vector<16x32xf32>
    %96 = arith.addf %92, %93 : vector<16x32xf32>
    %97 = arith.addf %94, %95 : vector<16x32xf32>
    %98 = arith.addf %96, %97 : vector<16x32xf32>
    %99 = tpu.concatenate %60, %98 in 0 : vector<16x32xf32>, vector<16x32xf32> -> vector<32x32xf32>
    %100 = arith.truncf %99 : vector<32x32xf32> to vector<32x32xbf16>
    %c0_30 = arith.constant 0 : index
    %c0_31 = arith.constant 0 : index
    %101 = vector.load %arg10[%c0_30, %c0_31] : memref<32x32xbf16, #tpu.memory_space<vmem>>, vector<32x32xbf16>
    %cst_32 = arith.constant dense<0.000000e+00> : vector<32x32xf32>
    %102 = tpu.matmul %100, %101, %cst_32 {dimension_numbers = #tpu.dot_dimension_numbers<[1], [0], [0], [1], [0, 0, 1, 1], [], []>} : vector<32x32xbf16>, vector<32x32xbf16>, vector<32x32xf32> -> vector<32x32xf32>
    %c0_33 = arith.constant 0 : index
    %c0_34 = arith.constant 0 : index
    %103 = vector.load %arg11[%c0_33, %c0_34] : memref<1x32xf32, #tpu.memory_space<vmem>>, vector<1x32xf32>
    %104 = vector.broadcast %103 : vector<1x32xf32> to vector<32x32xf32>
    %105 = arith.addf %102, %104 : vector<32x32xf32>
    %106 = arith.addf %4, %105 : vector<32x32xf32>
    %cst_35 = arith.constant dense<0.000000e+00> : vector<32xf32>
    %107 = vector.multi_reduction <add>, %106, %cst_35 [1] : vector<32x32xf32> to vector<32xf32>
    %108 = vector.shape_cast %107 : vector<32xf32> to vector<32x1xf32>
    %cst_36 = arith.constant 3.200000e+01 : f32
    %109 = vector.broadcast %cst_36 : f32 to vector<32x1xf32>
    %110 = arith.divf %108, %109 : vector<32x1xf32>
    %111 = vector.broadcast %110 : vector<32x1xf32> to vector<32x32xf32>
    %112 = arith.subf %106, %111 : vector<32x32xf32>
    %113 = arith.mulf %112, %112 : vector<32x32xf32>
    %cst_37 = arith.constant dense<0.000000e+00> : vector<32xf32>
    %114 = vector.multi_reduction <add>, %113, %cst_37 [1] : vector<32x32xf32> to vector<32xf32>
    %115 = vector.shape_cast %114 : vector<32xf32> to vector<32x1xf32>
    %cst_38 = arith.constant 3.200000e+01 : f32
    %116 = vector.broadcast %cst_38 : f32 to vector<32x1xf32>
    %117 = arith.divf %115, %116 : vector<32x1xf32>
    %118 = vector.broadcast %110 : vector<32x1xf32> to vector<32x32xf32>
    %119 = arith.subf %106, %118 : vector<32x32xf32>
    %cst_39 = arith.constant 9.99999974E-6 : f32
    %120 = vector.broadcast %cst_39 : f32 to vector<32x1xf32>
    %121 = arith.addf %117, %120 : vector<32x1xf32>
    %122 = math.rsqrt %121 : vector<32x1xf32>
    %123 = vector.broadcast %122 : vector<32x1xf32> to vector<32x32xf32>
    %124 = arith.mulf %119, %123 : vector<32x32xf32>
    %c0_40 = arith.constant 0 : index
    %c0_41 = arith.constant 0 : index
    %125 = vector.load %arg12[%c0_40, %c0_41] : memref<1x32xf32, #tpu.memory_space<vmem>>, vector<1x32xf32>
    %126 = vector.broadcast %125 : vector<1x32xf32> to vector<32x32xf32>
    %127 = arith.mulf %124, %126 : vector<32x32xf32>
    %c0_42 = arith.constant 0 : index
    %c0_43 = arith.constant 0 : index
    %128 = vector.load %arg13[%c0_42, %c0_43] : memref<1x32xf32, #tpu.memory_space<vmem>>, vector<1x32xf32>
    %129 = vector.broadcast %128 : vector<1x32xf32> to vector<32x32xf32>
    %130 = arith.addf %127, %129 : vector<32x32xf32>
    %131 = arith.truncf %130 : vector<32x32xf32> to vector<32x32xbf16>
    %c0_44 = arith.constant 0 : index
    %c0_45 = arith.constant 0 : index
    %132 = vector.load %arg14[%c0_44, %c0_45] : memref<32x512xbf16, #tpu.memory_space<vmem>>, vector<32x512xbf16>
    %cst_46 = arith.constant dense<0.000000e+00> : vector<32x512xf32>
    %133 = tpu.matmul %131, %132, %cst_46 {dimension_numbers = #tpu.dot_dimension_numbers<[1], [0], [0], [1], [0, 0, 1, 1], [], []>} : vector<32x32xbf16>, vector<32x512xbf16>, vector<32x512xf32> -> vector<32x512xf32>
    %c0_47 = arith.constant 0 : index
    %c0_48 = arith.constant 0 : index
    %134 = vector.load %arg15[%c0_47, %c0_48] : memref<1x512xf32, #tpu.memory_space<vmem>>, vector<1x512xf32>
    %135 = vector.broadcast %134 : vector<1x512xf32> to vector<32x512xf32>
    %136 = arith.addf %133, %135 : vector<32x512xf32>
    %cst_49 = arith.constant 0.000000e+00 : f32
    %137 = vector.broadcast %cst_49 : f32 to vector<32x512xf32>
    %138 = arith.maximumf %136, %137 : vector<32x512xf32>
    %139 = arith.truncf %138 : vector<32x512xf32> to vector<32x512xbf16>
    %c0_50 = arith.constant 0 : index
    %c0_51 = arith.constant 0 : index
    %140 = vector.load %arg16[%c0_50, %c0_51] : memref<512x32xbf16, #tpu.memory_space<vmem>>, vector<512x32xbf16>
    %cst_52 = arith.constant dense<0.000000e+00> : vector<32x32xf32>
    %141 = tpu.matmul %139, %140, %cst_52 {dimension_numbers = #tpu.dot_dimension_numbers<[1], [0], [0], [1], [0, 0, 1, 1], [], []>} : vector<32x512xbf16>, vector<512x32xbf16>, vector<32x32xf32> -> vector<32x32xf32>
    %c0_53 = arith.constant 0 : index
    %c0_54 = arith.constant 0 : index
    %142 = vector.load %arg17[%c0_53, %c0_54] : memref<1x32xf32, #tpu.memory_space<vmem>>, vector<1x32xf32>
    %143 = vector.broadcast %142 : vector<1x32xf32> to vector<32x32xf32>
    %144 = arith.addf %141, %143 : vector<32x32xf32>
    %145 = arith.addf %130, %144 : vector<32x32xf32>
    %cst_55 = arith.constant dense<0.000000e+00> : vector<32xf32>
    %146 = vector.multi_reduction <add>, %145, %cst_55 [1] : vector<32x32xf32> to vector<32xf32>
    %147 = vector.shape_cast %146 : vector<32xf32> to vector<32x1xf32>
    %cst_56 = arith.constant 3.200000e+01 : f32
    %148 = vector.broadcast %cst_56 : f32 to vector<32x1xf32>
    %149 = arith.divf %147, %148 : vector<32x1xf32>
    %150 = vector.broadcast %149 : vector<32x1xf32> to vector<32x32xf32>
    %151 = arith.subf %145, %150 : vector<32x32xf32>
    %152 = arith.mulf %151, %151 : vector<32x32xf32>
    %cst_57 = arith.constant dense<0.000000e+00> : vector<32xf32>
    %153 = vector.multi_reduction <add>, %152, %cst_57 [1] : vector<32x32xf32> to vector<32xf32>
    %154 = vector.shape_cast %153 : vector<32xf32> to vector<32x1xf32>
    %cst_58 = arith.constant 3.200000e+01 : f32
    %155 = vector.broadcast %cst_58 : f32 to vector<32x1xf32>
    %156 = arith.divf %154, %155 : vector<32x1xf32>
    %157 = vector.broadcast %149 : vector<32x1xf32> to vector<32x32xf32>
    %158 = arith.subf %145, %157 : vector<32x32xf32>
    %cst_59 = arith.constant 9.99999974E-6 : f32
    %159 = vector.broadcast %cst_59 : f32 to vector<32x1xf32>
    %160 = arith.addf %156, %159 : vector<32x1xf32>
    %161 = math.rsqrt %160 : vector<32x1xf32>
    %162 = vector.broadcast %161 : vector<32x1xf32> to vector<32x32xf32>
    %163 = arith.mulf %158, %162 : vector<32x32xf32>
    %c0_60 = arith.constant 0 : index
    %c0_61 = arith.constant 0 : index
    %164 = vector.load %arg18[%c0_60, %c0_61] : memref<1x32xf32, #tpu.memory_space<vmem>>, vector<1x32xf32>
    %165 = vector.broadcast %164 : vector<1x32xf32> to vector<32x32xf32>
    %166 = arith.mulf %163, %165 : vector<32x32xf32>
    %c0_62 = arith.constant 0 : index
    %c0_63 = arith.constant 0 : index
    %167 = vector.load %arg19[%c0_62, %c0_63] : memref<1x32xf32, #tpu.memory_space<vmem>>, vector<1x32xf32>
    %168 = vector.broadcast %167 : vector<1x32xf32> to vector<32x32xf32>
    %169 = arith.addf %166, %168 : vector<32x32xf32>
    %170 = vector.extract_strided_slice %169 {offsets = [0, 0], sizes = [16, 32], strides = [1, 1]} : vector<32x32xf32> to vector<16x32xf32>
    %c0_64 = arith.constant 0 : index
    %c0_65 = arith.constant 0 : index
    %c0_66 = arith.constant 0 : index
    %171 = vector.load %arg20[%c0_64, %c0_65, %c0_66] : memref<2x16x32xf32, #tpu.memory_space<vmem>>, vector<1x16x32xf32>
    %172 = vector.shape_cast %171 : vector<1x16x32xf32> to vector<16x32xf32>
    %173 = vector.shape_cast %170 : vector<16x32xf32> to vector<1x16x32xf32>
    tpu.vector_store %arg20[%c0_64, %c0_65, %c0_66], %173 {strides = array<i32>} : memref<2x16x32xf32, #tpu.memory_space<vmem>>, vector<1x16x32xf32>,
    %174 = vector.extract_strided_slice %169 {offsets = [16, 0], sizes = [16, 32], strides = [1, 1]} : vector<32x32xf32> to vector<16x32xf32>
    %c1_67 = arith.constant 1 : index
    %c0_68 = arith.constant 0 : index
    %c0_69 = arith.constant 0 : index
    %175 = vector.load %arg20[%c1_67, %c0_68, %c0_69] : memref<2x16x32xf32, #tpu.memory_space<vmem>>, vector<1x16x32xf32>
    %176 = vector.shape_cast %175 : vector<1x16x32xf32> to vector<16x32xf32>
    %177 = vector.shape_cast %174 : vector<16x32xf32> to vector<1x16x32xf32>
    tpu.vector_store %arg20[%c1_67, %c0_68, %c0_69], %177 {strides = array<i32>} : memref<2x16x32xf32, #tpu.memory_space<vmem>>, vector<1x16x32xf32>,
    return
  }
  func.func @transform_0(%arg0: i32) -> (i32, i32, i32) {
    %c0_i32 = arith.constant 0 : i32
    %c0_i32_0 = arith.constant 0 : i32
    %c0_i32_1 = arith.constant 0 : i32
    return %arg0, %c0_i32, %c0_i32_0 : i32, i32, i32
  }
  func.func @transform_1(%arg0: i32) -> (i32, i32) {
    %c0_i32 = arith.constant 0 : i32
    %c0_i32_0 = arith.constant 0 : i32
    %c0_i32_1 = arith.constant 0 : i32
    return %c0_i32, %c0_i32_0 : i32, i32
  }
  func.func @transform_2(%arg0: i32) -> (i32, i32) {
    %c0_i32 = arith.constant 0 : i32
    %c0_i32_0 = arith.constant 0 : i32
    %c0_i32_1 = arith.constant 0 : i32
    return %c0_i32, %c0_i32_0 : i32, i32
  }
  func.func @transform_3(%arg0: i32) -> (i32, i32) {
    %c0_i32 = arith.constant 0 : i32
    %c0_i32_0 = arith.constant 0 : i32
    %c0_i32_1 = arith.constant 0 : i32
    return %c0_i32, %c0_i32_0 : i32, i32
  }
  func.func @transform_4(%arg0: i32) -> (i32, i32) {
    %c0_i32 = arith.constant 0 : i32
    %c0_i32_0 = arith.constant 0 : i32
    %c0_i32_1 = arith.constant 0 : i32
    return %c0_i32, %c0_i32_0 : i32, i32
  }
  func.func @transform_5(%arg0: i32) -> (i32, i32) {
    %c0_i32 = arith.constant 0 : i32
    %c0_i32_0 = arith.constant 0 : i32
    %c0_i32_1 = arith.constant 0 : i32
    return %c0_i32, %c0_i32_0 : i32, i32
  }
  func.func @transform_6(%arg0: i32) -> (i32, i32) {
    %c0_i32 = arith.constant 0 : i32
    %c0_i32_0 = arith.constant 0 : i32
    %c0_i32_1 = arith.constant 0 : i32
    return %c0_i32, %c0_i32_0 : i32, i32
  }
  func.func @transform_7(%arg0: i32) -> (i32, i32) {
    %c0_i32 = arith.constant 0 : i32
    %c0_i32_0 = arith.constant 0 : i32
    %c0_i32_1 = arith.constant 0 : i32
    return %c0_i32, %c0_i32_0 : i32, i32
  }
  func.func @transform_8(%arg0: i32) -> (i32, i32) {
    %c0_i32 = arith.constant 0 : i32
    %c0_i32_0 = arith.constant 0 : i32
    %c0_i32_1 = arith.constant 0 : i32
    return %c0_i32, %c0_i32_0 : i32, i32
  }
  func.func @transform_9(%arg0: i32) -> (i32, i32) {
    %c0_i32 = arith.constant 0 : i32
    %c0_i32_0 = arith.constant 0 : i32
    %c0_i32_1 = arith.constant 0 : i32
    return %c0_i32, %c0_i32_0 : i32, i32
  }
  func.func @transform_10(%arg0: i32) -> (i32, i32) {
    %c0_i32 = arith.constant 0 : i32
    %c0_i32_0 = arith.constant 0 : i32
    %c0_i32_1 = arith.constant 0 : i32
    return %c0_i32, %c0_i32_0 : i32, i32
  }
  func.func @transform_11(%arg0: i32) -> (i32, i32) {
    %c0_i32 = arith.constant 0 : i32
    %c0_i32_0 = arith.constant 0 : i32
    %c0_i32_1 = arith.constant 0 : i32
    return %c0_i32, %c0_i32_0 : i32, i32
  }
  func.func @transform_12(%arg0: i32) -> (i32, i32) {
    %c0_i32 = arith.constant 0 : i32
    %c0_i32_0 = arith.constant 0 : i32
    %c0_i32_1 = arith.constant 0 : i32
    return %c0_i32, %c0_i32_0 : i32, i32
  }
  func.func @transform_13(%arg0: i32) -> (i32, i32) {
    %c0_i32 = arith.constant 0 : i32
    %c0_i32_0 = arith.constant 0 : i32
    %c0_i32_1 = arith.constant 0 : i32
    return %c0_i32, %c0_i32_0 : i32, i32
  }
  func.func @transform_14(%arg0: i32) -> (i32, i32) {
    %c0_i32 = arith.constant 0 : i32
    %c0_i32_0 = arith.constant 0 : i32
    %c0_i32_1 = arith.constant 0 : i32
    return %c0_i32, %c0_i32_0 : i32, i32
  }
  func.func @transform_15(%arg0: i32) -> (i32, i32) {
    %c0_i32 = arith.constant 0 : i32
    %c0_i32_0 = arith.constant 0 : i32
    %c0_i32_1 = arith.constant 0 : i32
    return %c0_i32, %c0_i32_0 : i32, i32
  }
  func.func @transform_16(%arg0: i32) -> (i32, i32) {
    %c0_i32 = arith.constant 0 : i32
    %c0_i32_0 = arith.constant 0 : i32
    %c0_i32_1 = arith.constant 0 : i32
    return %c0_i32, %c0_i32_0 : i32, i32
  }
  func.func @transform_17(%arg0: i32) -> (i32, i32) {
    %c0_i32 = arith.constant 0 : i32
    %c0_i32_0 = arith.constant 0 : i32
    %c0_i32_1 = arith.constant 0 : i32
    return %c0_i32, %c0_i32_0 : i32, i32
  }
  func.func @transform_18(%arg0: i32) -> (i32, i32) {
    %c0_i32 = arith.constant 0 : i32
    %c0_i32_0 = arith.constant 0 : i32
    %c0_i32_1 = arith.constant 0 : i32
    return %c0_i32, %c0_i32_0 : i32, i32
  }
  func.func @transform_19(%arg0: i32) -> (i32, i32, i32) {
    %c0_i32 = arith.constant 0 : i32
    %c0_i32_0 = arith.constant 0 : i32
    %c0_i32_1 = arith.constant 0 : i32
    return %arg0, %c0_i32, %c0_i32_0 : i32, i32, i32
  }
}

</mosaic_0001>

<llo_original>
// kernel: tpu_custom_call.1
$region0: #{tpu_custom_call.1}
  #allocation0 [shape = 'u32[]', space=smem, size = 0x4, offset = 0x4, fixed_abs, tag = 'smem constant byte address 0x4 - core index']
  #allocation1 [shape = 'u32[144,128]{1,0:T(1,128)}', space=vmem, size = 0x12000, scoped, tag = 'internal scratch']
  %s0 = inlined_call_operand.vmem [shape: f32[2,16,32], index: 0, kind: input, shape index: {}]
  %s1 = inlined_call_operand.vmem [shape: f32[128,16], index: 1, kind: input, shape index: {}]
  %s2 = inlined_call_operand.vmem [shape: f32[128,32], index: 2, kind: input, shape index: {}]
  %s3 = inlined_call_operand.vmem [shape: bf16[32,32], index: 3, kind: input, shape index: {}]
  %s4 = inlined_call_operand.vmem [shape: f32[1,32], index: 4, kind: input, shape index: {}]
  %s5 = inlined_call_operand.vmem [shape: bf16[32,32], index: 5, kind: input, shape index: {}]
  %s6 = inlined_call_operand.vmem [shape: f32[1,32], index: 6, kind: input, shape index: {}]
  %s7 = inlined_call_operand.vmem [shape: bf16[32,32], index: 7, kind: input, shape index: {}]
  %s8 = inlined_call_operand.vmem [shape: f32[1,32], index: 8, kind: input, shape index: {}]
  %s9 = inlined_call_operand.vmem [shape: bf16[32,32], index: 9, kind: input, shape index: {}]
  %s10 = inlined_call_operand.vmem [shape: f32[1,32], index: 10, kind: input, shape index: {}]
  %s11 = inlined_call_operand.vmem [shape: f32[1,32], index: 11, kind: input, shape index: {}]
  %s12 = inlined_call_operand.vmem [shape: f32[1,32], index: 12, kind: input, shape index: {}]
  %s13 = inlined_call_operand.vmem [shape: bf16[32,512], index: 13, kind: input, shape index: {}]
  %s14 = inlined_call_operand.vmem [shape: f32[1,512], index: 14, kind: input, shape index: {}]
  %s15 = inlined_call_operand.vmem [shape: bf16[512,32], index: 15, kind: input, shape index: {}]
  %s16 = inlined_call_operand.vmem [shape: f32[1,32], index: 16, kind: input, shape index: {}]
  %s17 = inlined_call_operand.vmem [shape: f32[1,32], index: 17, kind: input, shape index: {}]
  %s18 = inlined_call_operand.vmem [shape: f32[1,32], index: 18, kind: input, shape index: {}]
  %s19 = inlined_call_operand.hbm [shape: f32[2,16,32], index: 19, kind: output, shape index: {}]
  %s20 = sld [smem:[#allocation0]]
  $region86: #{tpu_custom_call.1} parent=0
    _
  %s22 = ssub.s32 1, %s20
  %s23 = scalar_select 0, %s22, %s20
  $region1: #{tpu_custom_call.1} parent=0
    #allocation2 [shape = 'u8[16384]{0}', space=vmem, size = 0x4000, scoped, tag = 'output window, operand 0, single buffered']
    #allocation3 [shape = 's32[1]{0}', space=sflag, size = 0x4, scoped, tag = 'scoped memory for tpu_custom_call.1']
    %24 = vsyncpa [#allocation3], 0
    // Predicated region
    $region2: #{tpu_custom_call.1} parent=1 // pred_check
      _
    $region3: #{tpu_custom_call.1} parent=1 // pred_check_branch
      %26 = sbr.rel (0) target = $region5
    $region4: #{tpu_custom_call.1} parent=1 // pred_region
      _
    $region5: #{tpu_custom_call.1} parent=1 // pred_fallthru
      _
    // Predicated region
    $region6: #{tpu_custom_call.1} parent=1 // pred_check
      _
    $region7: #{tpu_custom_call.1} parent=1 // pred_check_branch
      %28 = sbr.rel (0) target = $region9
    $region8: #{tpu_custom_call.1} parent=1 // pred_region
      _
    $region9: #{tpu_custom_call.1} parent=1 // pred_fallthru
      _
    // Predicated region
    $region10: #{tpu_custom_call.1} parent=1 // pred_check
      _
    $region11: #{tpu_custom_call.1} parent=1 // pred_check_branch
      %30 = sbr.rel (0) target = $region13
    $region12: #{tpu_custom_call.1} parent=1 // pred_region
      _
    $region13: #{tpu_custom_call.1} parent=1 // pred_fallthru
      _
    // Predicated region
    $region14: #{tpu_custom_call.1} parent=1 // pred_check
      _
    $region15: #{tpu_custom_call.1} parent=1 // pred_check_branch
      %32 = sbr.rel (0) target = $region17
    $region16: #{tpu_custom_call.1} parent=1 // pred_region
      _
    $region17: #{tpu_custom_call.1} parent=1 // pred_fallthru
      _
    // Predicated region
    $region18: #{tpu_custom_call.1} parent=1 // pred_check
      _
    $region19: #{tpu_custom_call.1} parent=1 // pred_check_branch
      %34 = sbr.rel (0) target = $region21
    $region20: #{tpu_custom_call.1} parent=1 // pred_region
      _
    $region21: #{tpu_custom_call.1} parent=1 // pred_fallthru
      _
    // Predicated region
    $region22: #{tpu_custom_call.1} parent=1 // pred_check
      _
    $region23: #{tpu_custom_call.1} parent=1 // pred_check_branch
      %36 = sbr.rel (0) target = $region25
    $region24: #{tpu_custom_call.1} parent=1 // pred_region
      _
    $region25: #{tpu_custom_call.1} parent=1 // pred_fallthru
      _
    // Predicated region
    $region26: #{tpu_custom_call.1} parent=1 // pred_check
      _
    $region27: #{tpu_custom_call.1} parent=1 // pred_check_branch
      %38 = sbr.rel (0) target = $region29
    $region28: #{tpu_custom_call.1} parent=1 // pred_region
      _
    $region29: #{tpu_custom_call.1} parent=1 // pred_fallthru
      _
    // Predicated region
    $region30: #{tpu_custom_call.1} parent=1 // pred_check
      _
    $region31: #{tpu_custom_call.1} parent=1 // pred_check_branch
      %40 = sbr.rel (0) target = $region33
    $region32: #{tpu_custom_call.1} parent=1 // pred_region
      _
    $region33: #{tpu_custom_call.1} parent=1 // pred_fallthru
      _
    // Predicated region
    $region34: #{tpu_custom_call.1} parent=1 // pred_check
      _
    $region35: #{tpu_custom_call.1} parent=1 // pred_check_branch
      %42 = sbr.rel (0) target = $region37
    $region36: #{tpu_custom_call.1} parent=1 // pred_region
      _
    $region37: #{tpu_custom_call.1} parent=1 // pred_fallthru
      _
    // Predicated region
    $region38: #{tpu_custom_call.1} parent=1 // pred_check
      _
    $region39: #{tpu_custom_call.1} parent=1 // pred_check_branch
      %44 = sbr.rel (0) target = $region41
    $region40: #{tpu_custom_call.1} parent=1 // pred_region
      _
    $region41: #{tpu_custom_call.1} parent=1 // pred_fallthru
      _
    // Predicated region
    $region42: #{tpu_custom_call.1} parent=1 // pred_check
      _
    $region43: #{tpu_custom_call.1} parent=1 // pred_check_branch
      %46 = sbr.rel (0) target = $region45
    $region44: #{tpu_custom_call.1} parent=1 // pred_region
      _
    $region45: #{tpu_custom_call.1} parent=1 // pred_fallthru
      _
    // Predicated region
    $region46: #{tpu_custom_call.1} parent=1 // pred_check
      _
    $region47: #{tpu_custom_call.1} parent=1 // pred_check_branch
      %48 = sbr.rel (0) target = $region49
    $region48: #{tpu_custom_call.1} parent=1 // pred_region
      _
    $region49: #{tpu_custom_call.1} parent=1 // pred_fallthru
      _
    // Predicated region
    $region50: #{tpu_custom_call.1} parent=1 // pred_check
      _
    $region51: #{tpu_custom_call.1} parent=1 // pred_check_branch
      %50 = sbr.rel (0) target = $region53
    $region52: #{tpu_custom_call.1} parent=1 // pred_region
      _
    $region53: #{tpu_custom_call.1} parent=1 // pred_fallthru
      _
    // Predicated region
    $region54: #{tpu_custom_call.1} parent=1 // pred_check
      _
    $region55: #{tpu_custom_call.1} parent=1 // pred_check_branch
      %52 = sbr.rel (0) target = $region57
    $region56: #{tpu_custom_call.1} parent=1 // pred_region
      _
    $region57: #{tpu_custom_call.1} parent=1 // pred_fallthru
      _
    // Predicated region
    $region58: #{tpu_custom_call.1} parent=1 // pred_check
      _
    $region59: #{tpu_custom_call.1} parent=1 // pred_check_branch
      %54 = sbr.rel (0) target = $region61
    $region60: #{tpu_custom_call.1} parent=1 // pred_region
      _
    $region61: #{tpu_custom_call.1} parent=1 // pred_fallthru
      _
    // Predicated region
    $region62: #{tpu_custom_call.1} parent=1 // pred_check
      _
    $region63: #{tpu_custom_call.1} parent=1 // pred_check_branch
      %56 = sbr.rel (0) target = $region65
    $region64: #{tpu_custom_call.1} parent=1 // pred_region
      _
    $region65: #{tpu_custom_call.1} parent=1 // pred_fallthru
      _
    // Predicated region
    $region66: #{tpu_custom_call.1} parent=1 // pred_check
      _
    $region67: #{tpu_custom_call.1} parent=1 // pred_check_branch
      %58 = sbr.rel (0) target = $region69
    $region68: #{tpu_custom_call.1} parent=1 // pred_region
      _
    $region69: #{tpu_custom_call.1} parent=1 // pred_fallthru
      _
    // Predicated region
    $region70: #{tpu_custom_call.1} parent=1 // pred_check
      _
    $region71: #{tpu_custom_call.1} parent=1 // pred_check_branch
      %60 = sbr.rel (0) target = $region73
    $region72: #{tpu_custom_call.1} parent=1 // pred_region
      _
    $region73: #{tpu_custom_call.1} parent=1 // pred_fallthru
      _
    // Predicated region
    $region74: #{tpu_custom_call.1} parent=1 // pred_check
      _
    $region75: #{tpu_custom_call.1} parent=1 // pred_check_branch
      %62 = sbr.rel (0) target = $region77
    $region76: #{tpu_custom_call.1} parent=1 // pred_region
      _
    $region77: #{tpu_custom_call.1} parent=1 // pred_fallthru
      _
    %v64 = vld [vmem:[%s0] sm:$0xff]
    %v65 = vld [vmem:[%s0 + $0x8] sm:$0xff]
    %s66 = scalar_lea.vmem %s0, 16
    %v67 = vld [vmem:[%s66] sm:$0xff]
    %v68 = vld [vmem:[%s66 + $0x8] sm:$0xff]
    %v69 = vpack.c.bf16 %v65, %v64
    %v70 = vpack.c.bf16 %v68, %v67
    %v71 = vld [vmem:[%s3] sm:$0xf]
    %v72 = vld [vmem:[%s3 + $0x4] sm:$0xf]
    %v73 = vld [vmem:[%s3 + $0x8] sm:$0xf]
    %v74 = vld [vmem:[%s3 + $0xc] sm:$0xf]
    %v75 = vld [vmem:[%s4] sm:$0x1]
    %v77 = vlaneseq
    %v78 = vshrl.u32 %v77, 7
    %v79 = vsub.s32 0, %v78
    %v80 = vrot.slane %v75, %v79
    %v86 = vunpack.c.l.b16 %v71
    %v87 = vunpack.c.l.b16 %v72
    %v88 = vunpack.c.l.b16 %v73
    %v89 = vunpack.c.l.b16 %v74
    %v90 = vpack.c.b16 %v87, %v86
    %v91 = vpack.c.b16 %v89, %v88
    %vm94 = vcmask 261120
    %v96 = vsel %vm94, %v69, 0
    %v99 = vsel %vm94, %v70, 0
    %101 = vmatprep.subr.bf16.mxu0 0
    %102 = vmatpush1.bf16.msra.mxu0 %v90
    %103 = vmatprep.subr.bf16.mxu0 0
    %104 = vmatpush1.bf16.msra.mxu0 %v91
    %105 = vmatprep.subr.bf16.mxu0 0
    %106 = vmatpush1.bf16.msra.mxu0 0
    %107 = vmatprep.subr.bf16.mxu0 0
    %108 = vmatpush1.bf16.msra.mxu0 0
    %109 = vmatprep.subr.bf16.mxu0 0
    %110 = vmatpush1.bf16.msra.mxu0 0
    %111 = vmatprep.subr.bf16.mxu0 0
    %112 = vmatpush1.bf16.msra.mxu0 0
    %113 = vmatprep.subr.bf16.mxu0 0
    %114 = vmatpush1.bf16.msra.mxu0 0
    %115 = vmatprep.subr.bf16.mxu0 0
    %116 = vmatpush1.bf16.msra.mxu0 0
    %117 = vmatprep.subr.bf16.mxu0 0
    %118 = vmatpush1.bf16.msra.mxu0 0
    %119 = vmatprep.subr.bf16.mxu0 0
    %120 = vmatpush1.bf16.msra.mxu0 0
    %121 = vmatprep.subr.bf16.mxu0 0
    %122 = vmatpush1.bf16.msra.mxu0 0
    %123 = vmatprep.subr.bf16.mxu0 0
    %124 = vmatpush1.bf16.msra.mxu0 0
    %125 = vmatprep.subr.bf16.mxu0 0
    %126 = vmatpush1.bf16.msra.mxu0 0
    %127 = vmatprep.subr.bf16.mxu0 0
    %128 = vmatpush1.bf16.msra.mxu0 0
    %129 = vmatprep.subr.bf16.mxu0 0
    %130 = vmatpush1.bf16.msra.mxu0 0
    %131 = vmatprep.subr.bf16.mxu0 0
    %132 = vmatpush1.bf16.msra.mxu0 0
    %133 = vmatprep.mubr.bf16.mxu0 0
    %134 = vmatmul.mubr.bf16.gmra.mrb[0].mxu0 %v96
    %v135 = vpop.f32.mrb[0].mxu0
    %v136 = vadd.f32 %v80, %v135
    %v137 = vpop.f32.mrb[0].mxu0
    %v138 = vpop.f32.mrb[0].mxu0
    %v139 = vadd.f32 %v80, %v138
    %v140 = vpop.f32.mrb[0].mxu0
    %141 = vmatprep.mubr.bf16.mxu0 0
    %142 = vmatmul.mubr.bf16.gmra.mrb[0].mxu0 %v99
    %v143 = vpop.f32.mrb[0].mxu0
    %v144 = vadd.f32 %v80, %v143
    %v145 = vpop.f32.mrb[0].mxu0
    %v146 = vpop.f32.mrb[0].mxu0
    %v147 = vadd.f32 %v80, %v146
    %v148 = vpop.f32.mrb[0].mxu0
    %149 = vdwg.mxu0
    %v150 = vld [vmem:[%s5] sm:$0xf]
    %v151 = vld [vmem:[%s5 + $0x4] sm:$0xf]
    %v152 = vld [vmem:[%s5 + $0x8] sm:$0xf]
    %v153 = vld [vmem:[%s5 + $0xc] sm:$0xf]
    %v154 = vld [vmem:[%s6] sm:$0x1]
    %v156 = vlaneseq
    %v157 = vshrl.u32 %v156, 7
    %v158 = vsub.s32 0, %v157
    %v159 = vrot.slane %v154, %v158
    %v165 = vunpack.c.l.b16 %v150
    %v166 = vunpack.c.l.b16 %v151
    %v167 = vunpack.c.l.b16 %v152
    %v168 = vunpack.c.l.b16 %v153
    %v169 = vpack.c.b16 %v166, %v165
    %v170 = vpack.c.b16 %v168, %v167
    %173 = vmatprep.subr.bf16.mxu0 0
    %174 = vmatpush1.bf16.msra.mxu0 %v169
    %175 = vmatprep.subr.bf16.mxu0 0
    %176 = vmatpush1.bf16.msra.mxu0 %v170
    %177 = vmatprep.subr.bf16.mxu0 0
    %178 = vmatpush1.bf16.msra.mxu0 0
    %179 = vmatprep.subr.bf16.mxu0 0
    %180 = vmatpush1.bf16.msra.mxu0 0
    %181 = vmatprep.subr.bf16.mxu0 0
    %182 = vmatpush1.bf16.msra.mxu0 0
    %183 = vmatprep.subr.bf16.mxu0 0
    %184 = vmatpush1.bf16.msra.mxu0 0
    %185 = vmatprep.subr.bf16.mxu0 0
    %186 = vmatpush1.bf16.msra.mxu0 0
    %187 = vmatprep.subr.bf16.mxu0 0
    %188 = vmatpush1.bf16.msra.mxu0 0
    %189 = vmatprep.subr.bf16.mxu0 0
    %190 = vmatpush1.bf16.msra.mxu0 0
    %191 = vmatprep.subr.bf16.mxu0 0
    %192 = vmatpush1.bf16.msra.mxu0 0
    %193 = vmatprep.subr.bf16.mxu0 0
    %194 = vmatpush1.bf16.msra.mxu0 0
    %195 = vmatprep.subr.bf16.mxu0 0
    %196 = vmatpush1.bf16.msra.mxu0 0
    %197 = vmatprep.subr.bf16.mxu0 0
    %198 = vmatpush1.bf16.msra.mxu0 0
    %199 = vmatprep.subr.bf16.mxu0 0
    %200 = vmatpush1.bf16.msra.mxu0 0
    %201 = vmatprep.subr.bf16.mxu0 0
    %202 = vmatpush1.bf16.msra.mxu0 0
    %203 = vmatprep.subr.bf16.mxu0 0
    %204 = vmatpush1.bf16.msra.mxu0 0
    %205 = vmatprep.mubr.bf16.mxu0 0
    %206 = vmatmul.mubr.bf16.gmra.mrb[0].mxu0 %v96
    %v207 = vpop.f32.mrb[0].mxu0
    %v208 = vadd.f32 %v159, %v207
    %v209 = vpop.f32.mrb[0].mxu0
    %v210 = vpop.f32.mrb[0].mxu0
    %v211 = vadd.f32 %v159, %v210
    %v212 = vpop.f32.mrb[0].mxu0
    %213 = vmatprep.mubr.bf16.mxu0 0
    %214 = vmatmul.mubr.bf16.gmra.mrb[0].mxu0 %v99
    %v215 = vpop.f32.mrb[0].mxu0
    %v216 = vadd.f32 %v159, %v215
    %v217 = vpop.f32.mrb[0].mxu0
    %v218 = vpop.f32.mrb[0].mxu0
    %v219 = vadd.f32 %v159, %v218
    %v220 = vpop.f32.mrb[0].mxu0
    %221 = vdwg.mxu0
    %v222 = vld [vmem:[%s7] sm:$0xf]
    %v223 = vld [vmem:[%s7 + $0x4] sm:$0xf]
    %v224 = vld [vmem:[%s7 + $0x8] sm:$0xf]
    %v225 = vld [vmem:[%s7 + $0xc] sm:$0xf]
    %v226 = vld [vmem:[%s8] sm:$0x1]
    %v228 = vlaneseq
    %v229 = vshrl.u32 %v228, 7
    %v230 = vsub.s32 0, %v229
    %v231 = vrot.slane %v226, %v230
    %v237 = vunpack.c.l.b16 %v222
    %v238 = vunpack.c.l.b16 %v223
    %v239 = vunpack.c.l.b16 %v224
    %v240 = vunpack.c.l.b16 %v225
    %v241 = vpack.c.b16 %v238, %v237
    %v242 = vpack.c.b16 %v240, %v239
    %245 = vmatprep.subr.bf16.mxu0 0
    %246 = vmatpush1.bf16.msra.mxu0 %v241
    %247 = vmatprep.subr.bf16.mxu0 0
    %248 = vmatpush1.bf16.msra.mxu0 %v242
    %249 = vmatprep.subr.bf16.mxu0 0
    %250 = vmatpush1.bf16.msra.mxu0 0
    %251 = vmatprep.subr.bf16.mxu0 0
    %252 = vmatpush1.bf16.msra.mxu0 0
    %253 = vmatprep.subr.bf16.mxu0 0
    %254 = vmatpush1.bf16.msra.mxu0 0
    %255 = vmatprep.subr.bf16.mxu0 0
    %256 = vmatpush1.bf16.msra.mxu0 0
    %257 = vmatprep.subr.bf16.mxu0 0
    %258 = vmatpush1.bf16.msra.mxu0 0
    %259 = vmatprep.subr.bf16.mxu0 0
    %260 = vmatpush1.bf16.msra.mxu0 0
    %261 = vmatprep.subr.bf16.mxu0 0
    %262 = vmatpush1.bf16.msra.mxu0 0
    %263 = vmatprep.subr.bf16.mxu0 0
    %264 = vmatpush1.bf16.msra.mxu0 0
    %265 = vmatprep.subr.bf16.mxu0 0
    %266 = vmatpush1.bf16.msra.mxu0 0
    %267 = vmatprep.subr.bf16.mxu0 0
    %268 = vmatpush1.bf16.msra.mxu0 0
    %269 = vmatprep.subr.bf16.mxu0 0
    %270 = vmatpush1.bf16.msra.mxu0 0
    %271 = vmatprep.subr.bf16.mxu0 0
    %272 = vmatpush1.bf16.msra.mxu0 0
    %273 = vmatprep.subr.bf16.mxu0 0
    %274 = vmatpush1.bf16.msra.mxu0 0
    %275 = vmatprep.subr.bf16.mxu0 0
    %276 = vmatpush1.bf16.msra.mxu0 0
    %277 = vmatprep.mubr.bf16.mxu0 0
    %278 = vmatmul.mubr.bf16.gmra.mrb[0].mxu0 %v96
    %v279 = vpop.f32.mrb[0].mxu0
    %v280 = vadd.f32 %v231, %v279
    %v281 = vpop.f32.mrb[0].mxu0
    %v282 = vpop.f32.mrb[0].mxu0
    %v283 = vadd.f32 %v231, %v282
    %v284 = vpop.f32.mrb[0].mxu0
    %285 = vmatprep.mubr.bf16.mxu0 0
    %286 = vmatmul.mubr.bf16.gmra.mrb[0].mxu0 %v99
    %v287 = vpop.f32.mrb[0].mxu0
    %v288 = vadd.f32 %v231, %v287
    %v289 = vpop.f32.mrb[0].mxu0
    %v290 = vpop.f32.mrb[0].mxu0
    %v291 = vadd.f32 %v231, %v290
    %v292 = vpop.f32.mrb[0].mxu0
    %293 = vdwg.mxu0
    %v294 = vld [vmem:[%s2] sm:$0xff]
    %v295 = vld [vmem:[%s2 + $0x8] sm:$0xff]
    %v296 = vld [vmem:[%s2 + $0x10] sm:$0xff]
    %v297 = vld [vmem:[%s2 + $0x18] sm:$0xff]
    %v298 = vld [vmem:[%s2 + $0x20] sm:$0xff]
    %v299 = vld [vmem:[%s2 + $0x28] sm:$0xff]
    %v300 = vld [vmem:[%s2 + $0x30] sm:$0xff]
    %v301 = vld [vmem:[%s2 + $0x38] sm:$0xff]
    %v302 = vld [vmem:[%s2 + $0x40] sm:$0xff]
    %v303 = vld [vmem:[%s2 + $0x48] sm:$0xff]
    %v304 = vld [vmem:[%s2 + $0x50] sm:$0xff]
    %v305 = vld [vmem:[%s2 + $0x58] sm:$0xff]
    %v306 = vld [vmem:[%s2 + $0x60] sm:$0xff]
    %v307 = vld [vmem:[%s2 + $0x68] sm:$0xff]
    %v308 = vld [vmem:[%s2 + $0x70] sm:$0xff]
    %v309 = vld [vmem:[%s2 + $0x78] sm:$0xff]
    %v310 = vld [vmem:[%s1] sm:$0xff]
    %v311 = vld [vmem:[%s1 + $0x8] sm:$0xff]
    %v312 = vld [vmem:[%s1 + $0x10] sm:$0xff]
    %v313 = vld [vmem:[%s1 + $0x18] sm:$0xff]
    %v314 = vld [vmem:[%s1 + $0x20] sm:$0xff]
    %v315 = vld [vmem:[%s1 + $0x28] sm:$0xff]
    %v316 = vld [vmem:[%s1 + $0x30] sm:$0xff]
    %v317 = vld [vmem:[%s1 + $0x38] sm:$0xff]
    %v318 = vld [vmem:[%s1 + $0x40] sm:$0xff]
    %v319 = vld [vmem:[%s1 + $0x48] sm:$0xff]
    %v320 = vld [vmem:[%s1 + $0x50] sm:$0xff]
    %v321 = vld [vmem:[%s1 + $0x58] sm:$0xff]
    %v322 = vld [vmem:[%s1 + $0x60] sm:$0xff]
    %v323 = vld [vmem:[%s1 + $0x68] sm:$0xff]
    %v324 = vld [vmem:[%s1 + $0x70] sm:$0xff]
    %v325 = vld [vmem:[%s1 + $0x78] sm:$0xff]
    %v326 = vmul.f32 %v136, %v294
    %v327 = vmul.f32 %v139, %v295
    %v328 = vmul.f32 %v136, %v296
    %v329 = vmul.f32 %v139, %v297
    %v330 = vmul.f32 %v136, %v298
    %v331 = vmul.f32 %v139, %v299
    %v332 = vmul.f32 %v136, %v300
    %v333 = vmul.f32 %v139, %v301
    %v334 = vmul.f32 %v136, %v302
    %v335 = vmul.f32 %v139, %v303
    %v336 = vmul.f32 %v136, %v304
    %v337 = vmul.f32 %v139, %v305
    %v338 = vmul.f32 %v136, %v306
    %v339 = vmul.f32 %v139, %v307
    %v340 = vmul.f32 %v136, %v308
    %v341 = vmul.f32 %v139, %v309
    %v342 = vpack.c.bf16 %v327, %v326
    %v343 = vpack.c.bf16 %v329, %v328
    %v344 = vpack.c.bf16 %v331, %v330
    %v345 = vpack.c.bf16 %v333, %v332
    %v346 = vpack.c.bf16 %v335, %v334
    %v347 = vpack.c.bf16 %v337, %v336
    %v348 = vpack.c.bf16 %v339, %v338
    %v349 = vpack.c.bf16 %v341, %v340
    %v350 = vpack.c.bf16 %v211, %v208
    %v352 = vsel %vm94, %v342, 0
    %v355 = vsel %vm94, %v343, 0
    %v358 = vsel %vm94, %v344, 0
    %v361 = vsel %vm94, %v345, 0
    %v364 = vsel %vm94, %v346, 0
    %v367 = vsel %vm94, %v347, 0
    %v370 = vsel %vm94, %v348, 0
    %v373 = vsel %vm94, %v349, 0
    %v376 = vsel %vm94, %v350, 0
    %378 = vmatprep.subr.bf16.mxu0 0
    %379 = vmatpush1.bf16.xpose.msra.mxu0 %v376
    %380 = vmatprep.subr.bf16.mxu0 0
    %381 = vmatpush1.bf16.xpose.msra.mxu0 0
    %382 = vmatprep.subr.bf16.mxu0 0
    %383 = vmatpush1.bf16.xpose.msra.mxu0 0
    %384 = vmatprep.subr.bf16.mxu0 0
    %385 = vmatpush1.bf16.xpose.msra.mxu0 0
    %386 = vmatprep.subr.bf16.mxu0 0
    %387 = vmatpush1.bf16.xpose.msra.mxu0 0
    %388 = vmatprep.subr.bf16.mxu0 0
    %389 = vmatpush1.bf16.xpose.msra.mxu0 0
    %390 = vmatprep.subr.bf16.mxu0 0
    %391 = vmatpush1.bf16.xpose.msra.mxu0 0
    %392 = vmatprep.subr.bf16.mxu0 0
    %393 = vmatpush1.bf16.xpose.msra.mxu0 0
    %394 = vmatprep.subr.bf16.mxu0 0
    %395 = vmatpush1.bf16.xpose.msra.mxu0 0
    %396 = vmatprep.subr.bf16.mxu0 0
    %397 = vmatpush1.bf16.xpose.msra.mxu0 0
    %398 = vmatprep.subr.bf16.mxu0 0
    %399 = vmatpush1.bf16.xpose.msra.mxu0 0
    %400 = vmatprep.subr.bf16.mxu0 0
    %401 = vmatpush1.bf16.xpose.msra.mxu0 0
    %402 = vmatprep.subr.bf16.mxu0 0
    %403 = vmatpush1.bf16.xpose.msra.mxu0 0
    %404 = vmatprep.subr.bf16.mxu0 0
    %405 = vmatpush1.bf16.xpose.msra.mxu0 0
    %406 = vmatprep.subr.bf16.mxu0 0
    %407 = vmatpush1.bf16.xpose.msra.mxu0 0
    %408 = vmatprep.subr.bf16.mxu0 0
    %409 = vmatpush1.bf16.xpose.msra.mxu0 0
    %410 = vmatprep.mubr.bf16.mxu0 0
    %411 = vmatmul.mubr.bf16.gmra.mrb[0].mxu0 %v352
    %v412 = vpop.f32.mrb[0].mxu0
    %v413 = vadd.f32 %v310, %v412
    %v414 = vpop.f32.mrb[0].mxu0
    %v415 = vpop.f32.mrb[0].mxu0
    %v416 = vadd.f32 %v311, %v415
    %v417 = vpop.f32.mrb[0].mxu0
    %418 = vmatprep.mubr.bf16.mxu0 0
    %419 = vmatmul.mubr.bf16.gmra.mrb[0].mxu0 %v355
    %v420 = vpop.f32.mrb[0].mxu0
    %v421 = vadd.f32 %v312, %v420
    %v422 = vpop.f32.mrb[0].mxu0
    %v423 = vpop.f32.mrb[0].mxu0
    %v424 = vadd.f32 %v313, %v423
    %v425 = vpop.f32.mrb[0].mxu0
    %426 = vmatprep.mubr.bf16.mxu0 0
    %427 = vmatmul.mubr.bf16.gmra.mrb[0].mxu0 %v358
    %v428 = vpop.f32.mrb[0].mxu0
    %v429 = vadd.f32 %v314, %v428
    %v430 = vpop.f32.mrb[0].mxu0
    %v431 = vpop.f32.mrb[0].mxu0
    %v432 = vadd.f32 %v315, %v431
    %v433 = vpop.f32.mrb[0].mxu0
    %434 = vmatprep.mubr.bf16.mxu0 0
    %435 = vmatmul.mubr.bf16.gmra.mrb[0].mxu0 %v361
    %v436 = vpop.f32.mrb[0].mxu0
    %v437 = vadd.f32 %v316, %v436
    %v438 = vpop.f32.mrb[0].mxu0
    %v439 = vpop.f32.mrb[0].mxu0
    %v440 = vadd.f32 %v317, %v439
    %v441 = vpop.f32.mrb[0].mxu0
    %442 = vmatprep.mubr.bf16.mxu0 0
    %443 = vmatmul.mubr.bf16.gmra.mrb[0].mxu0 %v364
    %v444 = vpop.f32.mrb[0].mxu0
    %v445 = vadd.f32 %v318, %v444
    %v446 = vpop.f32.mrb[0].mxu0
    %v447 = vpop.f32.mrb[0].mxu0
    %v448 = vadd.f32 %v319, %v447
    %v449 = vpop.f32.mrb[0].mxu0
    %450 = vmatprep.mubr.bf16.mxu0 0
    %451 = vmatmul.mubr.bf16.gmra.mrb[0].mxu0 %v367
    %v452 = vpop.f32.mrb[0].mxu0
    %v453 = vadd.f32 %v320, %v452
    %v454 = vpop.f32.mrb[0].mxu0
    %v455 = vpop.f32.mrb[0].mxu0
    %v456 = vadd.f32 %v321, %v455
    %v457 = vpop.f32.mrb[0].mxu0
    %458 = vmatprep.mubr.bf16.mxu0 0
    %459 = vmatmul.mubr.bf16.gmra.mrb[0].mxu0 %v370
    %v460 = vpop.f32.mrb[0].mxu0
    %v461 = vadd.f32 %v322, %v460
    %v462 = vpop.f32.mrb[0].mxu0
    %v463 = vpop.f32.mrb[0].mxu0
    %v464 = vadd.f32 %v323, %v463
    %v465 = vpop.f32.mrb[0].mxu0
    %466 = vmatprep.mubr.bf16.mxu0 0
    %467 = vmatmul.mubr.bf16.gmra.mrb[0].mxu0 %v373
    %v468 = vpop.f32.mrb[0].mxu0
    %v469 = vadd.f32 %v324, %v468
    %v470 = vpop.f32.mrb[0].mxu0
    %v471 = vpop.f32.mrb[0].mxu0
    %v472 = vadd.f32 %v325, %v471
    %v473 = vpop.f32.mrb[0].mxu0
    %474 = vdwg.mxu0
    %vm475 = vcmask 130048
    %v476 = vsel %vm475, %v413, -inf
    %477 = vmax.xlane.f32.xlu0 %v476
    %v478 = vpop.xlane.xlu0 %477
    %v479 = vsel %vm475, %v416, -inf
    %480 = vmax.xlane.f32.xlu0 %v479
    %v481 = vpop.xlane.xlu0 %480
    %v482 = vsel %vm475, %v421, -inf
    %483 = vmax.xlane.f32.xlu0 %v482
    %v484 = vpop.xlane.xlu0 %483
    %v485 = vsel %vm475, %v424, -inf
    %486 = vmax.xlane.f32.xlu0 %v485
    %v487 = vpop.xlane.xlu0 %486
    %v488 = vsel %vm475, %v429, -inf
    %489 = vmax.xlane.f32.xlu0 %v488
    %v490 = vpop.xlane.xlu0 %489
    %v491 = vsel %vm475, %v432, -inf
    %492 = vmax.xlane.f32.xlu0 %v491
    %v493 = vpop.xlane.xlu0 %492
    %v494 = vsel %vm475, %v437, -inf
    %495 = vmax.xlane.f32.xlu0 %v494
    %v496 = vpop.xlane.xlu0 %495
    %v497 = vsel %vm475, %v440, -inf
    %498 = vmax.xlane.f32.xlu0 %v497
    %v499 = vpop.xlane.xlu0 %498
    %v500 = vsel %vm475, %v445, -inf
    %501 = vmax.xlane.f32.xlu0 %v500
    %v502 = vpop.xlane.xlu0 %501
    %v503 = vsel %vm475, %v448, -inf
    %504 = vmax.xlane.f32.xlu0 %v503
    %v505 = vpop.xlane.xlu0 %504
    %v506 = vsel %vm475, %v453, -inf
    %507 = vmax.xlane.f32.xlu0 %v506
    %v508 = vpop.xlane.xlu0 %507
    %v509 = vsel %vm475, %v456, -inf
    %510 = vmax.xlane.f32.xlu0 %v509
    %v511 = vpop.xlane.xlu0 %510
    %v512 = vsel %vm475, %v461, -inf
    %513 = vmax.xlane.f32.xlu0 %v512
    %v514 = vpop.xlane.xlu0 %513
    %v515 = vsel %vm475, %v464, -inf
    %516 = vmax.xlane.f32.xlu0 %v515
    %v517 = vpop.xlane.xlu0 %516
    %v518 = vsel %vm475, %v469, -inf
    %519 = vmax.xlane.f32.xlu0 %v518
    %v520 = vpop.xlane.xlu0 %519
    %v521 = vsel %vm475, %v472, -inf
    %522 = vmax.xlane.f32.xlu0 %v521
    %v523 = vpop.xlane.xlu0 %522
    %v524 = vsub.f32 %v413, %v478
    %v525 = vsub.f32 %v416, %v481
    %v526 = vsub.f32 %v421, %v484
    %v527 = vsub.f32 %v424, %v487
    %v528 = vsub.f32 %v429, %v490
    %v529 = vsub.f32 %v432, %v493
    %v530 = vsub.f32 %v437, %v496
    %v531 = vsub.f32 %v440, %v499
    %v532 = vsub.f32 %v445, %v502
    %v533 = vsub.f32 %v448, %v505
    %v534 = vsub.f32 %v453, %v508
    %v535 = vsub.f32 %v456, %v511
    %v536 = vsub.f32 %v461, %v514
    %v537 = vsub.f32 %v464, %v517
    %v538 = vsub.f32 %v469, %v520
    %v539 = vsub.f32 %v472, %v523
    %v540 = vmul.f32 %v524, 1.442695
    %v541 = vpow.pop %v540
    %v542 = vmul.f32 %v525, 1.442695
    %v543 = vpow.pop %v542
    %v544 = vmul.f32 %v526, 1.442695
    %v545 = vpow.pop %v544
    %v546 = vmul.f32 %v527, 1.442695
    %v547 = vpow.pop %v546
    %v548 = vmul.f32 %v528, 1.442695
    %v549 = vpow.pop %v548
    %v550 = vmul.f32 %v529, 1.442695
    %v551 = vpow.pop %v550
    %v552 = vmul.f32 %v530, 1.442695
    %v553 = vpow.pop %v552
    %v554 = vmul.f32 %v531, 1.442695
    %v555 = vpow.pop %v554
    %v556 = vmul.f32 %v532, 1.442695
    %v557 = vpow.pop %v556
    %v558 = vmul.f32 %v533, 1.442695
    %v559 = vpow.pop %v558
    %v560 = vmul.f32 %v534, 1.442695
    %v561 = vpow.pop %v560
    %v562 = vmul.f32 %v535, 1.442695
    %v563 = vpow.pop %v562
    %v564 = vmul.f32 %v536, 1.442695
    %v565 = vpow.pop %v564
    %v566 = vmul.f32 %v537, 1.442695
    %v567 = vpow.pop %v566
    %v568 = vmul.f32 %v538, 1.442695
    %v569 = vpow.pop %v568
    %v570 = vmul.f32 %v539, 1.442695
    %v571 = vpow.pop %v570
    %v572 = vsel %vm475, %v541, 0.0
    %573 = vadd.xlane.f32.xlu0 %v572
    %v574 = vpop.xlane.xlu0 %573
    %v575 = vsel %vm475, %v543, 0.0
    %576 = vadd.xlane.f32.xlu0 %v575
    %v577 = vpop.xlane.xlu0 %576
    %v578 = vsel %vm475, %v545, 0.0
    %579 = vadd.xlane.f32.xlu0 %v578
    %v580 = vpop.xlane.xlu0 %579
    %v581 = vsel %vm475, %v547, 0.0
    %582 = vadd.xlane.f32.xlu0 %v581
    %v583 = vpop.xlane.xlu0 %582
    %v584 = vsel %vm475, %v549, 0.0
    %585 = vadd.xlane.f32.xlu0 %v584
    %v586 = vpop.xlane.xlu0 %585
    %v587 = vsel %vm475, %v551, 0.0
    %588 = vadd.xlane.f32.xlu0 %v587
    %v589 = vpop.xlane.xlu0 %588
    %v590 = vsel %vm475, %v553, 0.0
    %591 = vadd.xlane.f32.xlu0 %v590
    %v592 = vpop.xlane.xlu0 %591
    %v593 = vsel %vm475, %v555, 0.0
    %594 = vadd.xlane.f32.xlu0 %v593
    %v595 = vpop.xlane.xlu0 %594
    %v596 = vsel %vm475, %v557, 0.0
    %597 = vadd.xlane.f32.xlu0 %v596
    %v598 = vpop.xlane.xlu0 %597
    %v599 = vsel %vm475, %v559, 0.0
    %600 = vadd.xlane.f32.xlu0 %v599
    %v601 = vpop.xlane.xlu0 %600
    %v602 = vsel %vm475, %v561, 0.0
    %603 = vadd.xlane.f32.xlu0 %v602
    %v604 = vpop.xlane.xlu0 %603
    %v605 = vsel %vm475, %v563, 0.0
    %606 = vadd.xlane.f32.xlu0 %v605
    %v607 = vpop.xlane.xlu0 %606
    %v608 = vsel %vm475, %v565, 0.0
    %609 = vadd.xlane.f32.xlu0 %v608
    %v610 = vpop.xlane.xlu0 %609
    %v611 = vsel %vm475, %v567, 0.0
    %612 = vadd.xlane.f32.xlu0 %v611
    %v613 = vpop.xlane.xlu0 %612
    %v614 = vsel %vm475, %v569, 0.0
    %615 = vadd.xlane.f32.xlu0 %v614
    %v616 = vpop.xlane.xlu0 %615
    %v617 = vsel %vm475, %v571, 0.0
    %618 = vadd.xlane.f32.xlu0 %v617
    %v619 = vpop.xlane.xlu0 %618
    %v620 = vrcp.pop %v574
    %v621 = vrcp.pop %v577
    %v622 = vrcp.pop %v580
    %v623 = vrcp.pop %v583
    %v624 = vrcp.pop %v586
    %v625 = vrcp.pop %v589
    %v626 = vrcp.pop %v592
    %v627 = vrcp.pop %v595
    %v628 = vrcp.pop %v598
    %v629 = vrcp.pop %v601
    %v630 = vrcp.pop %v604
    %v631 = vrcp.pop %v607
    %v632 = vrcp.pop %v610
    %v633 = vrcp.pop %v613
    %v634 = vrcp.pop %v616
    %v635 = vrcp.pop %v619
    %v636 = vpack.c.bf16 %v543, %v541
    %v637 = vpack.c.bf16 %v547, %v545
    %v638 = vpack.c.bf16 %v551, %v549
    %v639 = vpack.c.bf16 %v555, %v553
    %v640 = vpack.c.bf16 %v559, %v557
    %v641 = vpack.c.bf16 %v563, %v561
    %v642 = vpack.c.bf16 %v567, %v565
    %v643 = vpack.c.bf16 %v571, %v569
    %v644 = vpack.c.bf16 %v283, %v280
    %v646 = vsel %vm475, %v636, 0
    %v649 = vsel %vm475, %v637, 0
    %v652 = vsel %vm475, %v638, 0
    %v655 = vsel %vm475, %v639, 0
    %v658 = vsel %vm475, %v640, 0
    %v661 = vsel %vm475, %v641, 0
    %v664 = vsel %vm475, %v642, 0
    %v667 = vsel %vm475, %v643, 0
    %669 = vmatprep.subr.bf16.mxu0 0
    %670 = vmatpush1.bf16.msra.mxu0 %v644
    %671 = vmatprep.subr.bf16.mxu0 0
    %672 = vmatpush1.bf16.msra.mxu0 0
    %673 = vmatprep.subr.bf16.mxu0 0
    %674 = vmatpush1.bf16.msra.mxu0 0
    %675 = vmatprep.subr.bf16.mxu0 0
    %676 = vmatpush1.bf16.msra.mxu0 0
    %677 = vmatprep.subr.bf16.mxu0 0
    %678 = vmatpush1.bf16.msra.mxu0 0
    %679 = vmatprep.subr.bf16.mxu0 0
    %680 = vmatpush1.bf16.msra.mxu0 0
    %681 = vmatprep.subr.bf16.mxu0 0
    %682 = vmatpush1.bf16.msra.mxu0 0
    %683 = vmatprep.subr.bf16.mxu0 0
    %684 = vmatpush1.bf16.msra.mxu0 0
    %685 = vmatprep.subr.bf16.mxu0 0
    %686 = vmatpush1.bf16.msra.mxu0 0
    %687 = vmatprep.subr.bf16.mxu0 0
    %688 = vmatpush1.bf16.msra.mxu0 0
    %689 = vmatprep.subr.bf16.mxu0 0
    %690 = vmatpush1.bf16.msra.mxu0 0
    %691 = vmatprep.subr.bf16.mxu0 0
    %692 = vmatpush1.bf16.msra.mxu0 0
    %693 = vmatprep.subr.bf16.mxu0 0
    %694 = vmatpush1.bf16.msra.mxu0 0
    %695 = vmatprep.subr.bf16.mxu0 0
    %696 = vmatpush1.bf16.msra.mxu0 0
    %697 = vmatprep.subr.bf16.mxu0 0
    %698 = vmatpush1.bf16.msra.mxu0 0
    %699 = vmatprep.subr.bf16.mxu0 0
    %700 = vmatpush1.bf16.msra.mxu0 0
    %701 = vmatprep.mubr.bf16.mxu0 0
    %702 = vmatmul.mubr.bf16.gmra.mrb[0].mxu0 %v646
    %v703 = vpop.f32.mrb[0].mxu0
    %v704 = vadd.f32 0.0, %v703
    %v705 = vpop.f32.mrb[0].mxu0
    %v706 = vpop.f32.mrb[0].mxu0
    %v707 = vadd.f32 0.0, %v706
    %v708 = vpop.f32.mrb[0].mxu0
    %709 = vmatprep.mubr.bf16.mxu0 0
    %710 = vmatmul.mubr.bf16.gmra.mrb[0].mxu0 %v649
    %v711 = vpop.f32.mrb[0].mxu0
    %v712 = vadd.f32 0.0, %v711
    %v713 = vpop.f32.mrb[0].mxu0
    %v714 = vpop.f32.mrb[0].mxu0
    %v715 = vadd.f32 0.0, %v714
    %v716 = vpop.f32.mrb[0].mxu0
    %717 = vmatprep.mubr.bf16.mxu0 0
    %718 = vmatmul.mubr.bf16.gmra.mrb[0].mxu0 %v652
    %v719 = vpop.f32.mrb[0].mxu0
    %v720 = vadd.f32 0.0, %v719
    %v721 = vpop.f32.mrb[0].mxu0
    %v722 = vpop.f32.mrb[0].mxu0
    %v723 = vadd.f32 0.0, %v722
    %v724 = vpop.f32.mrb[0].mxu0
    %725 = vmatprep.mubr.bf16.mxu0 0
    %726 = vmatmul.mubr.bf16.gmra.mrb[0].mxu0 %v655
    %v727 = vpop.f32.mrb[0].mxu0
    %v728 = vadd.f32 0.0, %v727
    %v729 = vpop.f32.mrb[0].mxu0
    %v730 = vpop.f32.mrb[0].mxu0
    %v731 = vadd.f32 0.0, %v730
    %v732 = vpop.f32.mrb[0].mxu0
    %733 = vmatprep.mubr.bf16.mxu0 0
    %734 = vmatmul.mubr.bf16.gmra.mrb[0].mxu0 %v658
    %v735 = vpop.f32.mrb[0].mxu0
    %v736 = vadd.f32 0.0, %v735
    %v737 = vpop.f32.mrb[0].mxu0
    %v738 = vpop.f32.mrb[0].mxu0
    %v739 = vadd.f32 0.0, %v738
    %v740 = vpop.f32.mrb[0].mxu0
    %741 = vmatprep.mubr.bf16.mxu0 0
    %742 = vmatmul.mubr.bf16.gmra.mrb[0].mxu0 %v661
    %v743 = vpop.f32.mrb[0].mxu0
    %v744 = vadd.f32 0.0, %v743
    %v745 = vpop.f32.mrb[0].mxu0
    %v746 = vpop.f32.mrb[0].mxu0
    %v747 = vadd.f32 0.0, %v746
    %v748 = vpop.f32.mrb[0].mxu0
    %749 = vmatprep.mubr.bf16.mxu0 0
    %750 = vmatmul.mubr.bf16.gmra.mrb[0].mxu0 %v664
    %v751 = vpop.f32.mrb[0].mxu0
    %v752 = vadd.f32 0.0, %v751
    %v753 = vpop.f32.mrb[0].mxu0
    %v754 = vpop.f32.mrb[0].mxu0
    %v755 = vadd.f32 0.0, %v754
    %v756 = vpop.f32.mrb[0].mxu0
    %757 = vmatprep.mubr.bf16.mxu0 0
    %758 = vmatmul.mubr.bf16.gmra.mrb[0].mxu0 %v667
    %v759 = vpop.f32.mrb[0].mxu0
    %v760 = vadd.f32 0.0, %v759
    %v761 = vpop.f32.mrb[0].mxu0
    %v762 = vpop.f32.mrb[0].mxu0
    %v763 = vadd.f32 0.0, %v762
    %v764 = vpop.f32.mrb[0].mxu0
    %765 = vdwg.mxu0
    %v766 = vmul.f32 %v620, %v294
    %v767 = vmul.f32 %v621, %v295
    %v768 = vmul.f32 %v622, %v296
    %v769 = vmul.f32 %v623, %v297
    %v770 = vmul.f32 %v624, %v298
    %v771 = vmul.f32 %v625, %v299
    %v772 = vmul.f32 %v626, %v300
    %v773 = vmul.f32 %v627, %v301
    %v774 = vmul.f32 %v628, %v302
    %v775 = vmul.f32 %v629, %v303
    %v776 = vmul.f32 %v630, %v304
    %v777 = vmul.f32 %v631, %v305
    %v778 = vmul.f32 %v632, %v306
    %v779 = vmul.f32 %v633, %v307
    %v780 = vmul.f32 %v634, %v308
    %v781 = vmul.f32 %v635, %v309
    %v782 = vmul.f32 %v704, %v766
    %v783 = vmul.f32 %v707, %v767
    %v784 = vmul.f32 %v712, %v768
    %v785 = vmul.f32 %v715, %v769
    %v786 = vmul.f32 %v720, %v770
    %v787 = vmul.f32 %v723, %v771
    %v788 = vmul.f32 %v728, %v772
    %v789 = vmul.f32 %v731, %v773
    %v790 = vmul.f32 %v736, %v774
    %v791 = vmul.f32 %v739, %v775
    %v792 = vmul.f32 %v744, %v776
    %v793 = vmul.f32 %v747, %v777
    %v794 = vmul.f32 %v752, %v778
    %v795 = vmul.f32 %v755, %v779
    %v796 = vmul.f32 %v760, %v780
    %v797 = vmul.f32 %v763, %v781
    %v798 = vadd.f32 %v782, %v784
    %v799 = vadd.f32 %v783, %v785
    %v800 = vadd.f32 %v786, %v788
    %v801 = vadd.f32 %v787, %v789
    %v802 = vadd.f32 %v790, %v792
    %v803 = vadd.f32 %v791, %v793
    %v804 = vadd.f32 %v794, %v796
    %v805 = vadd.f32 %v795, %v797
    %v806 = vadd.f32 %v798, %v800
    %v807 = vadd.f32 %v799, %v801
    %v808 = vadd.f32 %v802, %v804
    %v809 = vadd.f32 %v803, %v805
    %v810 = vadd.f32 %v806, %v808
    %v811 = vadd.f32 %v807, %v809
    %v812 = vmul.f32 %v144, %v294
    %v813 = vmul.f32 %v147, %v295
    %v814 = vmul.f32 %v144, %v296
    %v815 = vmul.f32 %v147, %v297
    %v816 = vmul.f32 %v144, %v298
    %v817 = vmul.f32 %v147, %v299
    %v818 = vmul.f32 %v144, %v300
    %v819 = vmul.f32 %v147, %v301
    %v820 = vmul.f32 %v144, %v302
    %v821 = vmul.f32 %v147, %v303
    %v822 = vmul.f32 %v144, %v304
    %v823 = vmul.f32 %v147, %v305
    %v824 = vmul.f32 %v144, %v306
    %v825 = vmul.f32 %v147, %v307
    %v826 = vmul.f32 %v144, %v308
    %v827 = vmul.f32 %v147, %v309
    %v828 = vpack.c.bf16 %v813, %v812
    %v829 = vpack.c.bf16 %v815, %v814
    %v830 = vpack.c.bf16 %v817, %v816
    %v831 = vpack.c.bf16 %v819, %v818
    %v832 = vpack.c.bf16 %v821, %v820
    %v833 = vpack.c.bf16 %v823, %v822
    %v834 = vpack.c.bf16 %v825, %v824
    %v835 = vpack.c.bf16 %v827, %v826
    %v836 = vpack.c.bf16 %v219, %v216
    %v838 = vsel %vm94, %v828, 0
    %v841 = vsel %vm94, %v829, 0
    %v844 = vsel %vm94, %v830, 0
    %v847 = vsel %vm94, %v831, 0
    %v850 = vsel %vm94, %v832, 0
    %v853 = vsel %vm94, %v833, 0
    %v856 = vsel %vm94, %v834, 0
    %v859 = vsel %vm94, %v835, 0
    %v862 = vsel %vm94, %v836, 0
    %864 = vmatprep.subr.bf16.mxu0 0
    %865 = vmatpush1.bf16.xpose.msra.mxu0 %v862
    %866 = vmatprep.subr.bf16.mxu0 0
    %867 = vmatpush1.bf16.xpose.msra.mxu0 0
    %868 = vmatprep.subr.bf16.mxu0 0
    %869 = vmatpush1.bf16.xpose.msra.mxu0 0
    %870 = vmatprep.subr.bf16.mxu0 0
    %871 = vmatpush1.bf16.xpose.msra.mxu0 0
    %872 = vmatprep.subr.bf16.mxu0 0
    %873 = vmatpush1.bf16.xpose.msra.mxu0 0
    %874 = vmatprep.subr.bf16.mxu0 0
    %875 = vmatpush1.bf16.xpose.msra.mxu0 0
    %876 = vmatprep.subr.bf16.mxu0 0
    %877 = vmatpush1.bf16.xpose.msra.mxu0 0
    %878 = vmatprep.subr.bf16.mxu0 0
    %879 = vmatpush1.bf16.xpose.msra.mxu0 0
    %880 = vmatprep.subr.bf16.mxu0 0
    %881 = vmatpush1.bf16.xpose.msra.mxu0 0
    %882 = vmatprep.subr.bf16.mxu0 0
    %883 = vmatpush1.bf16.xpose.msra.mxu0 0
    %884 = vmatprep.subr.bf16.mxu0 0
    %885 = vmatpush1.bf16.xpose.msra.mxu0 0
    %886 = vmatprep.subr.bf16.mxu0 0
    %887 = vmatpush1.bf16.xpose.msra.mxu0 0
    %888 = vmatprep.subr.bf16.mxu0 0
    %889 = vmatpush1.bf16.xpose.msra.mxu0 0
    %890 = vmatprep.subr.bf16.mxu0 0
    %891 = vmatpush1.bf16.xpose.msra.mxu0 0
    %892 = vmatprep.subr.bf16.mxu0 0
    %893 = vmatpush1.bf16.xpose.msra.mxu0 0
    %894 = vmatprep.subr.bf16.mxu0 0
    %895 = vmatpush1.bf16.xpose.msra.mxu0 0
    %896 = vmatprep.mubr.bf16.mxu0 0
    %897 = vmatmul.mubr.bf16.gmra.mrb[0].mxu0 %v838
    %v898 = vpop.f32.mrb[0].mxu0
    %v899 = vadd.f32 %v310, %v898
    %v900 = vpop.f32.mrb[0].mxu0
    %v901 = vpop.f32.mrb[0].mxu0
    %v902 = vadd.f32 %v311, %v901
    %v903 = vpop.f32.mrb[0].mxu0
    %904 = vmatprep.mubr.bf16.mxu0 0
    %905 = vmatmul.mubr.bf16.gmra.mrb[0].mxu0 %v841
    %v906 = vpop.f32.mrb[0].mxu0
    %v907 = vadd.f32 %v312, %v906
    %v908 = vpop.f32.mrb[0].mxu0
    %v909 = vpop.f32.mrb[0].mxu0
    %v910 = vadd.f32 %v313, %v909
    %v911 = vpop.f32.mrb[0].mxu0
    %912 = vmatprep.mubr.bf16.mxu0 0
    %913 = vmatmul.mubr.bf16.gmra.mrb[0].mxu0 %v844
    %v914 = vpop.f32.mrb[0].mxu0
    %v915 = vadd.f32 %v314, %v914
    %v916 = vpop.f32.mrb[0].mxu0
    %v917 = vpop.f32.mrb[0].mxu0
    %v918 = vadd.f32 %v315, %v917
    %v919 = vpop.f32.mrb[0].mxu0
    %920 = vmatprep.mubr.bf16.mxu0 0
    %921 = vmatmul.mubr.bf16.gmra.mrb[0].mxu0 %v847
    %v922 = vpop.f32.mrb[0].mxu0
    %v923 = vadd.f32 %v316, %v922
    %v924 = vpop.f32.mrb[0].mxu0
    %v925 = vpop.f32.mrb[0].mxu0
    %v926 = vadd.f32 %v317, %v925
    %v927 = vpop.f32.mrb[0].mxu0
    %928 = vmatprep.mubr.bf16.mxu0 0
    %929 = vmatmul.mubr.bf16.gmra.mrb[0].mxu0 %v850
    %v930 = vpop.f32.mrb[0].mxu0
    %v931 = vadd.f32 %v318, %v930
    %v932 = vpop.f32.mrb[0].mxu0
    %v933 = vpop.f32.mrb[0].mxu0
    %v934 = vadd.f32 %v319, %v933
    %v935 = vpop.f32.mrb[0].mxu0
    %936 = vmatprep.mubr.bf16.mxu0 0
    %937 = vmatmul.mubr.bf16.gmra.mrb[0].mxu0 %v853
    %v938 = vpop.f32.mrb[0].mxu0
    %v939 = vadd.f32 %v320, %v938
    %v940 = vpop.f32.mrb[0].mxu0
    %v941 = vpop.f32.mrb[0].mxu0
    %v942 = vadd.f32 %v321, %v941
    %v943 = vpop.f32.mrb[0].mxu0
    %944 = vmatprep.mubr.bf16.mxu0 0
    %945 = vmatmul.mubr.bf16.gmra.mrb[0].mxu0 %v856
    %v946 = vpop.f32.mrb[0].mxu0
    %v947 = vadd.f32 %v322, %v946
    %v948 = vpop.f32.mrb[0].mxu0
    %v949 = vpop.f32.mrb[0].mxu0
    %v950 = vadd.f32 %v323, %v949
    %v951 = vpop.f32.mrb[0].mxu0
    %952 = vmatprep.mubr.bf16.mxu0 0
    %953 = vmatmul.mubr.bf16.gmra.mrb[0].mxu0 %v859
    %v954 = vpop.f32.mrb[0].mxu0
    %v955 = vadd.f32 %v324, %v954
    %v956 = vpop.f32.mrb[0].mxu0
    %v957 = vpop.f32.mrb[0].mxu0
    %v958 = vadd.f32 %v325, %v957
    %v959 = vpop.f32.mrb[0].mxu0
    %960 = vdwg.mxu0
    %v961 = vsel %vm475, %v899, -inf
    %962 = vmax.xlane.f32.xlu0 %v961
    %v963 = vpop.xlane.xlu0 %962
    %v964 = vsel %vm475, %v902, -inf
    %965 = vmax.xlane.f32.xlu0 %v964
    %v966 = vpop.xlane.xlu0 %965
    %v967 = vsel %vm475, %v907, -inf
    %968 = vmax.xlane.f32.xlu0 %v967
    %v969 = vpop.xlane.xlu0 %968
    %v970 = vsel %vm475, %v910, -inf
    %971 = vmax.xlane.f32.xlu0 %v970
    %v972 = vpop.xlane.xlu0 %971
    %v973 = vsel %vm475, %v915, -inf
    %974 = vmax.xlane.f32.xlu0 %v973
    %v975 = vpop.xlane.xlu0 %974
    %v976 = vsel %vm475, %v918, -inf
    %977 = vmax.xlane.f32.xlu0 %v976
    %v978 = vpop.xlane.xlu0 %977
    %v979 = vsel %vm475, %v923, -inf
    %980 = vmax.xlane.f32.xlu0 %v979
    %v981 = vpop.xlane.xlu0 %980
    %v982 = vsel %vm475, %v926, -inf
    %983 = vmax.xlane.f32.xlu0 %v982
    %v984 = vpop.xlane.xlu0 %983
    %v985 = vsel %vm475, %v931, -inf
    %986 = vmax.xlane.f32.xlu0 %v985
    %v987 = vpop.xlane.xlu0 %986
    %v988 = vsel %vm475, %v934, -inf
    %989 = vmax.xlane.f32.xlu0 %v988
    %v990 = vpop.xlane.xlu0 %989
    %v991 = vsel %vm475, %v939, -inf
    %992 = vmax.xlane.f32.xlu0 %v991
    %v993 = vpop.xlane.xlu0 %992
    %v994 = vsel %vm475, %v942, -inf
    %995 = vmax.xlane.f32.xlu0 %v994
    %v996 = vpop.xlane.xlu0 %995
    %v997 = vsel %vm475, %v947, -inf
    %998 = vmax.xlane.f32.xlu0 %v997
    %v999 = vpop.xlane.xlu0 %998
    %v1000 = vsel %vm475, %v950, -inf
    %1001 = vmax.xlane.f32.xlu0 %v1000
    %v1002 = vpop.xlane.xlu0 %1001
    %v1003 = vsel %vm475, %v955, -inf
    %1004 = vmax.xlane.f32.xlu0 %v1003
    %v1005 = vpop.xlane.xlu0 %1004
    %v1006 = vsel %vm475, %v958, -inf
    %1007 = vmax.xlane.f32.xlu0 %v1006
    %v1008 = vpop.xlane.xlu0 %1007
    %v1009 = vsub.f32 %v899, %v963
    %v1010 = vsub.f32 %v902, %v966
    %v1011 = vsub.f32 %v907, %v969
    %v1012 = vsub.f32 %v910, %v972
    %v1013 = vsub.f32 %v915, %v975
    %v1014 = vsub.f32 %v918, %v978
    %v1015 = vsub.f32 %v923, %v981
    %v1016 = vsub.f32 %v926, %v984
    %v1017 = vsub.f32 %v931, %v987
    %v1018 = vsub.f32 %v934, %v990
    %v1019 = vsub.f32 %v939, %v993
    %v1020 = vsub.f32 %v942, %v996
    %v1021 = vsub.f32 %v947, %v999
    %v1022 = vsub.f32 %v950, %v1002
    %v1023 = vsub.f32 %v955, %v1005
    %v1024 = vsub.f32 %v958, %v1008
    %v1025 = vmul.f32 %v1009, 1.442695
    %v1026 = vpow.pop %v1025
    %v1027 = vmul.f32 %v1010, 1.442695
    %v1028 = vpow.pop %v1027
    %v1029 = vmul.f32 %v1011, 1.442695
    %v1030 = vpow.pop %v1029
    %v1031 = vmul.f32 %v1012, 1.442695
    %v1032 = vpow.pop %v1031
    %v1033 = vmul.f32 %v1013, 1.442695
    %v1034 = vpow.pop %v1033
    %v1035 = vmul.f32 %v1014, 1.442695
    %v1036 = vpow.pop %v1035
    %v1037 = vmul.f32 %v1015, 1.442695
    %v1038 = vpow.pop %v1037
    %v1039 = vmul.f32 %v1016, 1.442695
    %v1040 = vpow.pop %v1039
    %v1041 = vmul.f32 %v1017, 1.442695
    %v1042 = vpow.pop %v1041
    %v1043 = vmul.f32 %v1018, 1.442695
    %v1044 = vpow.pop %v1043
    %v1045 = vmul.f32 %v1019, 1.442695
    %v1046 = vpow.pop %v1045
    %v1047 = vmul.f32 %v1020, 1.442695
    %v1048 = vpow.pop %v1047
    %v1049 = vmul.f32 %v1021, 1.442695
    %v1050 = vpow.pop %v1049
    %v1051 = vmul.f32 %v1022, 1.442695
    %v1052 = vpow.pop %v1051
    %v1053 = vmul.f32 %v1023, 1.442695
    %v1054 = vpow.pop %v1053
    %v1055 = vmul.f32 %v1024, 1.442695
    %v1056 = vpow.pop %v1055
    %v1057 = vsel %vm475, %v1026, 0.0
    %1058 = vadd.xlane.f32.xlu0 %v1057
    %v1059 = vpop.xlane.xlu0 %1058
    %v1060 = vsel %vm475, %v1028, 0.0
    %1061 = vadd.xlane.f32.xlu0 %v1060
    %v1062 = vpop.xlane.xlu0 %1061
    %v1063 = vsel %vm475, %v1030, 0.0
    %1064 = vadd.xlane.f32.xlu0 %v1063
    %v1065 = vpop.xlane.xlu0 %1064
    %v1066 = vsel %vm475, %v1032, 0.0
    %1067 = vadd.xlane.f32.xlu0 %v1066
    %v1068 = vpop.xlane.xlu0 %1067
    %v1069 = vsel %vm475, %v1034, 0.0
    %1070 = vadd.xlane.f32.xlu0 %v1069
    %v1071 = vpop.xlane.xlu0 %1070
    %v1072 = vsel %vm475, %v1036, 0.0
    %1073 = vadd.xlane.f32.xlu0 %v1072
    %v1074 = vpop.xlane.xlu0 %1073
    %v1075 = vsel %vm475, %v1038, 0.0
    %1076 = vadd.xlane.f32.xlu0 %v1075
    %v1077 = vpop.xlane.xlu0 %1076
    %v1078 = vsel %vm475, %v1040, 0.0
    %1079 = vadd.xlane.f32.xlu0 %v1078
    %v1080 = vpop.xlane.xlu0 %1079
    %v1081 = vsel %vm475, %v1042, 0.0
    %1082 = vadd.xlane.f32.xlu0 %v1081
    %v1083 = vpop.xlane.xlu0 %1082
    %v1084 = vsel %vm475, %v1044, 0.0
    %1085 = vadd.xlane.f32.xlu0 %v1084
    %v1086 = vpop.xlane.xlu0 %1085
    %v1087 = vsel %vm475, %v1046, 0.0
    %1088 = vadd.xlane.f32.xlu0 %v1087
    %v1089 = vpop.xlane.xlu0 %1088
    %v1090 = vsel %vm475, %v1048, 0.0
    %1091 = vadd.xlane.f32.xlu0 %v1090
    %v1092 = vpop.xlane.xlu0 %1091
    %v1093 = vsel %vm475, %v1050, 0.0
    %1094 = vadd.xlane.f32.xlu0 %v1093
    %v1095 = vpop.xlane.xlu0 %1094
    %v1096 = vsel %vm475, %v1052, 0.0
    %1097 = vadd.xlane.f32.xlu0 %v1096
    %v1098 = vpop.xlane.xlu0 %1097
    %v1099 = vsel %vm475, %v1054, 0.0
    %1100 = vadd.xlane.f32.xlu0 %v1099
    %v1101 = vpop.xlane.xlu0 %1100
    %v1102 = vsel %vm475, %v1056, 0.0
    %1103 = vadd.xlane.f32.xlu0 %v1102
    %v1104 = vpop.xlane.xlu0 %1103
    %v1105 = vrcp.pop %v1059
    %v1106 = vrcp.pop %v1062
    %v1107 = vrcp.pop %v1065
    %v1108 = vrcp.pop %v1068
    %v1109 = vrcp.pop %v1071
    %v1110 = vrcp.pop %v1074
    %v1111 = vrcp.pop %v1077
    %v1112 = vrcp.pop %v1080
    %v1113 = vrcp.pop %v1083
    %v1114 = vrcp.pop %v1086
    %v1115 = vrcp.pop %v1089
    %v1116 = vrcp.pop %v1092
    %v1117 = vrcp.pop %v1095
    %v1118 = vrcp.pop %v1098
    %v1119 = vrcp.pop %v1101
    %v1120 = vrcp.pop %v1104
    %v1121 = vpack.c.bf16 %v1028, %v1026
    %v1122 = vpack.c.bf16 %v1032, %v1030
    %v1123 = vpack.c.bf16 %v1036, %v1034
    %v1124 = vpack.c.bf16 %v1040, %v1038
    %v1125 = vpack.c.bf16 %v1044, %v1042
    %v1126 = vpack.c.bf16 %v1048, %v1046
    %v1127 = vpack.c.bf16 %v1052, %v1050
    %v1128 = vpack.c.bf16 %v1056, %v1054
    %v1129 = vpack.c.bf16 %v291, %v288
    %v1131 = vsel %vm475, %v1121, 0
    %v1134 = vsel %vm475, %v1122, 0
    %v1137 = vsel %vm475, %v1123, 0
    %v1140 = vsel %vm475, %v1124, 0
    %v1143 = vsel %vm475, %v1125, 0
    %v1146 = vsel %vm475, %v1126, 0
    %v1149 = vsel %vm475, %v1127, 0
    %v1152 = vsel %vm475, %v1128, 0
    %1154 = vmatprep.subr.bf16.mxu0 0
    %1155 = vmatpush1.bf16.msra.mxu0 %v1129
    %1156 = vmatprep.subr.bf16.mxu0 0
    %1157 = vmatpush1.bf16.msra.mxu0 0
    %1158 = vmatprep.subr.bf16.mxu0 0
    %1159 = vmatpush1.bf16.msra.mxu0 0
    %1160 = vmatprep.subr.bf16.mxu0 0
    %1161 = vmatpush1.bf16.msra.mxu0 0
    %1162 = vmatprep.subr.bf16.mxu0 0
    %1163 = vmatpush1.bf16.msra.mxu0 0
    %1164 = vmatprep.subr.bf16.mxu0 0
    %1165 = vmatpush1.bf16.msra.mxu0 0
    %1166 = vmatprep.subr.bf16.mxu0 0
    %1167 = vmatpush1.bf16.msra.mxu0 0
    %1168 = vmatprep.subr.bf16.mxu0 0
    %1169 = vmatpush1.bf16.msra.mxu0 0
    %1170 = vmatprep.subr.bf16.mxu0 0
    %1171 = vmatpush1.bf16.msra.mxu0 0
    %1172 = vmatprep.subr.bf16.mxu0 0
    %1173 = vmatpush1.bf16.msra.mxu0 0
    %1174 = vmatprep.subr.bf16.mxu0 0
    %1175 = vmatpush1.bf16.msra.mxu0 0
    %1176 = vmatprep.subr.bf16.mxu0 0
    %1177 = vmatpush1.bf16.msra.mxu0 0
    %1178 = vmatprep.subr.bf16.mxu0 0
    %1179 = vmatpush1.bf16.msra.mxu0 0
    %1180 = vmatprep.subr.bf16.mxu0 0
    %1181 = vmatpush1.bf16.msra.mxu0 0
    %1182 = vmatprep.subr.bf16.mxu0 0
    %1183 = vmatpush1.bf16.msra.mxu0 0
    %1184 = vmatprep.subr.bf16.mxu0 0
    %1185 = vmatpush1.bf16.msra.mxu0 0
    %1186 = vmatprep.mubr.bf16.mxu0 0
    %1187 = vmatmul.mubr.bf16.gmra.mrb[0].mxu0 %v1131
    %v1188 = vpop.f32.mrb[0].mxu0
    %v1189 = vadd.f32 0.0, %v1188
    %v1190 = vpop.f32.mrb[0].mxu0
    %v1191 = vpop.f32.mrb[0].mxu0
    %v1192 = vadd.f32 0.0, %v1191
    %v1193 = vpop.f32.mrb[0].mxu0
    %1194 = vmatprep.mubr.bf16.mxu0 0
    %1195 = vmatmul.mubr.bf16.gmra.mrb[0].mxu0 %v1134
    %v1196 = vpop.f32.mrb[0].mxu0
    %v1197 = vadd.f32 0.0, %v1196
    %v1198 = vpop.f32.mrb[0].mxu0
    %v1199 = vpop.f32.mrb[0].mxu0
    %v1200 = vadd.f32 0.0, %v1199
    %v1201 = vpop.f32.mrb[0].mxu0
    %1202 = vmatprep.mubr.bf16.mxu0 0
    %1203 = vmatmul.mubr.bf16.gmra.mrb[0].mxu0 %v1137
    %v1204 = vpop.f32.mrb[0].mxu0
    %v1205 = vadd.f32 0.0, %v1204
    %v1206 = vpop.f32.mrb[0].mxu0
    %v1207 = vpop.f32.mrb[0].mxu0
    %v1208 = vadd.f32 0.0, %v1207
    %v1209 = vpop.f32.mrb[0].mxu0
    %1210 = vmatprep.mubr.bf16.mxu0 0
    %1211 = vmatmul.mubr.bf16.gmra.mrb[0].mxu0 %v1140
    %v1212 = vpop.f32.mrb[0].mxu0
    %v1213 = vadd.f32 0.0, %v1212
    %v1214 = vpop.f32.mrb[0].mxu0
    %v1215 = vpop.f32.mrb[0].mxu0
    %v1216 = vadd.f32 0.0, %v1215
    %v1217 = vpop.f32.mrb[0].mxu0
    %1218 = vmatprep.mubr.bf16.mxu0 0
    %1219 = vmatmul.mubr.bf16.gmra.mrb[0].mxu0 %v1143
    %v1220 = vpop.f32.mrb[0].mxu0
    %v1221 = vadd.f32 0.0, %v1220
    %v1222 = vpop.f32.mrb[0].mxu0
    %v1223 = vpop.f32.mrb[0].mxu0
    %v1224 = vadd.f32 0.0, %v1223
    %v1225 = vpop.f32.mrb[0].mxu0
    %1226 = vmatprep.mubr.bf16.mxu0 0
    %1227 = vmatmul.mubr.bf16.gmra.mrb[0].mxu0 %v1146
    %v1228 = vpop.f32.mrb[0].mxu0
    %v1229 = vadd.f32 0.0, %v1228
    %v1230 = vpop.f32.mrb[0].mxu0
    %v1231 = vpop.f32.mrb[0].mxu0
    %v1232 = vadd.f32 0.0, %v1231
    %v1233 = vpop.f32.mrb[0].mxu0
    %1234 = vmatprep.mubr.bf16.mxu0 0
    %1235 = vmatmul.mubr.bf16.gmra.mrb[0].mxu0 %v1149
    %v1236 = vpop.f32.mrb[0].mxu0
    %v1237 = vadd.f32 0.0, %v1236
    %v1238 = vpop.f32.mrb[0].mxu0
    %v1239 = vpop.f32.mrb[0].mxu0
    %v1240 = vadd.f32 0.0, %v1239
    %v1241 = vpop.f32.mrb[0].mxu0
    %1242 = vmatprep.mubr.bf16.mxu0 0
    %1243 = vmatmul.mubr.bf16.gmra.mrb[0].mxu0 %v1152
    %v1244 = vpop.f32.mrb[0].mxu0
    %v1245 = vadd.f32 0.0, %v1244
    %v1246 = vpop.f32.mrb[0].mxu0
    %v1247 = vpop.f32.mrb[0].mxu0
    %v1248 = vadd.f32 0.0, %v1247
    %v1249 = vpop.f32.mrb[0].mxu0
    %1250 = vdwg.mxu0
    %v1251 = vmul.f32 %v1105, %v294
    %v1252 = vmul.f32 %v1106, %v295
    %v1253 = vmul.f32 %v1107, %v296
    %v1254 = vmul.f32 %v1108, %v297
    %v1255 = vmul.f32 %v1109, %v298
    %v1256 = vmul.f32 %v1110, %v299
    %v1257 = vmul.f32 %v1111, %v300
    %v1258 = vmul.f32 %v1112, %v301
    %v1259 = vmul.f32 %v1113, %v302
    %v1260 = vmul.f32 %v1114, %v303
    %v1261 = vmul.f32 %v1115, %v304
    %v1262 = vmul.f32 %v1116, %v305
    %v1263 = vmul.f32 %v1117, %v306
    %v1264 = vmul.f32 %v1118, %v307
    %v1265 = vmul.f32 %v1119, %v308
    %v1266 = vmul.f32 %v1120, %v309
    %v1267 = vmul.f32 %v1189, %v1251
    %v1268 = vmul.f32 %v1192, %v1252
    %v1269 = vmul.f32 %v1197, %v1253
    %v1270 = vmul.f32 %v1200, %v1254
    %v1271 = vmul.f32 %v1205, %v1255
    %v1272 = vmul.f32 %v1208, %v1256
    %v1273 = vmul.f32 %v1213, %v1257
    %v1274 = vmul.f32 %v1216, %v1258
    %v1275 = vmul.f32 %v1221, %v1259
    %v1276 = vmul.f32 %v1224, %v1260
    %v1277 = vmul.f32 %v1229, %v1261
    %v1278 = vmul.f32 %v1232, %v1262
    %v1279 = vmul.f32 %v1237, %v1263
    %v1280 = vmul.f32 %v1240, %v1264
    %v1281 = vmul.f32 %v1245, %v1265
    %v1282 = vmul.f32 %v1248, %v1266
    %v1283 = vadd.f32 %v1267, %v1269
    %v1284 = vadd.f32 %v1268, %v1270
    %v1285 = vadd.f32 %v1271, %v1273
    %v1286 = vadd.f32 %v1272, %v1274
    %v1287 = vadd.f32 %v1275, %v1277
    %v1288 = vadd.f32 %v1276, %v1278
    %v1289 = vadd.f32 %v1279, %v1281
    %v1290 = vadd.f32 %v1280, %v1282
    %v1291 = vadd.f32 %v1283, %v1285
    %v1292 = vadd.f32 %v1284, %v1286
    %v1293 = vadd.f32 %v1287, %v1289
    %v1294 = vadd.f32 %v1288, %v1290
    %v1295 = vadd.f32 %v1291, %v1293
    %v1296 = vadd.f32 %v1292, %v1294
    %v1297 = vpack.c.bf16 %v811, %v810
    %v1298 = vpack.c.bf16 %v1296, %v1295
    %v1299 = vld [vmem:[%s9] sm:$0xf]
    %v1300 = vld [vmem:[%s9 + $0x4] sm:$0xf]
    %v1301 = vld [vmem:[%s9 + $0x8] sm:$0xf]
    %v1302 = vld [vmem:[%s9 + $0xc] sm:$0xf]
    %v1303 = vld [vmem:[%s10] sm:$0x1]
    %v1305 = vlaneseq
    %v1306 = vshrl.u32 %v1305, 7
    %v1307 = vsub.s32 0, %v1306
    %v1308 = vrot.slane %v1303, %v1307
    %v1314 = vunpack.c.l.b16 %v1299
    %v1315 = vunpack.c.l.b16 %v1300
    %v1316 = vunpack.c.l.b16 %v1301
    %v1317 = vunpack.c.l.b16 %v1302
    %v1318 = vpack.c.b16 %v1315, %v1314
    %v1319 = vpack.c.b16 %v1317, %v1316
    %v1323 = vsel %vm94, %v1297, 0
    %v1326 = vsel %vm94, %v1298, 0
    %1328 = vmatprep.subr.bf16.mxu0 0
    %1329 = vmatpush1.bf16.msra.mxu0 %v1318
    %1330 = vmatprep.subr.bf16.mxu0 0
    %1331 = vmatpush1.bf16.msra.mxu0 %v1319
    %1332 = vmatprep.subr.bf16.mxu0 0
    %1333 = vmatpush1.bf16.msra.mxu0 0
    %1334 = vmatprep.subr.bf16.mxu0 0
    %1335 = vmatpush1.bf16.msra.mxu0 0
    %1336 = vmatprep.subr.bf16.mxu0 0
    %1337 = vmatpush1.bf16.msra.mxu0 0
    %1338 = vmatprep.subr.bf16.mxu0 0
    %1339 = vmatpush1.bf16.msra.mxu0 0
    %1340 = vmatprep.subr.bf16.mxu0 0
    %1341 = vmatpush1.bf16.msra.mxu0 0
    %1342 = vmatprep.subr.bf16.mxu0 0
    %1343 = vmatpush1.bf16.msra.mxu0 0
    %1344 = vmatprep.subr.bf16.mxu0 0
    %1345 = vmatpush1.bf16.msra.mxu0 0
    %1346 = vmatprep.subr.bf16.mxu0 0
    %1347 = vmatpush1.bf16.msra.mxu0 0
    %1348 = vmatprep.subr.bf16.mxu0 0
    %1349 = vmatpush1.bf16.msra.mxu0 0
    %1350 = vmatprep.subr.bf16.mxu0 0
    %1351 = vmatpush1.bf16.msra.mxu0 0
    %1352 = vmatprep.subr.bf16.mxu0 0
    %1353 = vmatpush1.bf16.msra.mxu0 0
    %1354 = vmatprep.subr.bf16.mxu0 0
    %1355 = vmatpush1.bf16.msra.mxu0 0
    %1356 = vmatprep.subr.bf16.mxu0 0
    %1357 = vmatpush1.bf16.msra.mxu0 0
    %1358 = vmatprep.subr.bf16.mxu0 0
    %1359 = vmatpush1.bf16.msra.mxu0 0
    %1360 = vmatprep.mubr.bf16.mxu0 0
    %1361 = vmatmul.mubr.bf16.gmra.mrb[0].mxu0 %v1323
    %v1362 = vpop.f32.mrb[0].mxu0
    %v1363 = vadd.f32 %v1308, %v1362
    %v1364 = vpop.f32.mrb[0].mxu0
    %v1365 = vpop.f32.mrb[0].mxu0
    %v1366 = vadd.f32 %v1308, %v1365
    %v1367 = vpop.f32.mrb[0].mxu0
    %1368 = vmatprep.mubr.bf16.mxu0 0
    %1369 = vmatmul.mubr.bf16.gmra.mrb[0].mxu0 %v1326
    %v1370 = vpop.f32.mrb[0].mxu0
    %v1371 = vadd.f32 %v1308, %v1370
    %v1372 = vpop.f32.mrb[0].mxu0
    %v1373 = vpop.f32.mrb[0].mxu0
    %v1374 = vadd.f32 %v1308, %v1373
    %v1375 = vpop.f32.mrb[0].mxu0
    %1376 = vdwg.mxu0
    %v1377 = vadd.f32 %v64, %v1363
    %v1378 = vadd.f32 %v65, %v1366
    %v1379 = vadd.f32 %v67, %v1371
    %v1380 = vadd.f32 %v68, %v1374
    %v1381 = vsel %vm94, %v1377, 0.0
    %1382 = vadd.xlane.f32.xlu0 %v1381
    %v1383 = vpop.xlane.xlu0 %1382
    %v1384 = vsel %vm94, %v1378, 0.0
    %1385 = vadd.xlane.f32.xlu0 %v1384
    %v1386 = vpop.xlane.xlu0 %1385
    %v1387 = vsel %vm94, %v1379, 0.0
    %1388 = vadd.xlane.f32.xlu0 %v1387
    %v1389 = vpop.xlane.xlu0 %1388
    %v1390 = vsel %vm94, %v1380, 0.0
    %1391 = vadd.xlane.f32.xlu0 %v1390
    %v1392 = vpop.xlane.xlu0 %1391
    %v1393 = vrcp.pop 32.0
    %v1394 = vmul.f32 %v1383, %v1393
    %v1395 = vmul.f32 %v1386, %v1393
    %v1396 = vmul.f32 %v1389, %v1393
    %v1397 = vmul.f32 %v1392, %v1393
    %v1398 = vsub.f32 %v1377, %v1394
    %v1399 = vsub.f32 %v1378, %v1395
    %v1400 = vsub.f32 %v1379, %v1396
    %v1401 = vsub.f32 %v1380, %v1397
    %v1402 = vmul.f32 %v1398, %v1398
    %v1403 = vmul.f32 %v1399, %v1399
    %v1404 = vmul.f32 %v1400, %v1400
    %v1405 = vmul.f32 %v1401, %v1401
    %v1406 = vsel %vm94, %v1402, 0.0
    %1407 = vadd.xlane.f32.xlu0 %v1406
    %v1408 = vpop.xlane.xlu0 %1407
    %v1409 = vsel %vm94, %v1403, 0.0
    %1410 = vadd.xlane.f32.xlu0 %v1409
    %v1411 = vpop.xlane.xlu0 %1410
    %v1412 = vsel %vm94, %v1404, 0.0
    %1413 = vadd.xlane.f32.xlu0 %v1412
    %v1414 = vpop.xlane.xlu0 %1413
    %v1415 = vsel %vm94, %v1405, 0.0
    %1416 = vadd.xlane.f32.xlu0 %v1415
    %v1417 = vpop.xlane.xlu0 %1416
    %v1418 = vmul.f32 %v1408, %v1393
    %v1419 = vmul.f32 %v1411, %v1393
    %v1420 = vmul.f32 %v1414, %v1393
    %v1421 = vmul.f32 %v1417, %v1393
    %v1422 = vadd.f32 %v1418, 1e-05
    %v1423 = vadd.f32 %v1419, 1e-05
    %v1424 = vadd.f32 %v1420, 1e-05
    %v1425 = vadd.f32 %v1421, 1e-05
    %v1426 = vrsqrt.pop %v1422
    %v1427 = vrsqrt.pop %v1423
    %v1428 = vrsqrt.pop %v1424
    %v1429 = vrsqrt.pop %v1425
    %v1430 = vmul.f32 %v1398, %v1426
    %v1431 = vmul.f32 %v1399, %v1427
    %v1432 = vmul.f32 %v1400, %v1428
    %v1433 = vmul.f32 %v1401, %v1429
    %v1434 = vld [vmem:[%s11] sm:$0x1]
    %v1436 = vlaneseq
    %v1437 = vshrl.u32 %v1436, 7
    %v1438 = vsub.s32 0, %v1437
    %v1439 = vrot.slane %v1434, %v1438
    %v1441 = vmul.f32 %v1430, %v1439
    %v1442 = vmul.f32 %v1431, %v1439
    %v1443 = vmul.f32 %v1432, %v1439
    %v1444 = vmul.f32 %v1433, %v1439
    %v1445 = vld [vmem:[%s12] sm:$0x1]
    %v1447 = vlaneseq
    %v1448 = vshrl.u32 %v1447, 7
    %v1449 = vsub.s32 0, %v1448
    %v1450 = vrot.slane %v1445, %v1449
    %v1452 = vadd.f32 %v1441, %v1450
    %v1453 = vadd.f32 %v1442, %v1450
    %v1454 = vadd.f32 %v1443, %v1450
    %v1455 = vadd.f32 %v1444, %v1450
    %v1456 = vpack.c.bf16 %v1453, %v1452
    %v1457 = vpack.c.bf16 %v1455, %v1454
    %v1458 = vld [vmem:[%s13] sm:$0xff]
    %v1459 = vld [vmem:[%s13 + $0x8] sm:$0xff]
    %v1460 = vld [vmem:[%s13 + $0x10] sm:$0xff]
    %v1461 = vld [vmem:[%s13 + $0x18] sm:$0xff]
    %v1462 = vld [vmem:[%s13 + $0x20] sm:$0xff]
    %v1463 = vld [vmem:[%s13 + $0x28] sm:$0xff]
    %v1464 = vld [vmem:[%s13 + $0x30] sm:$0xff]
    %v1465 = vld [vmem:[%s13 + $0x38] sm:$0xff]
    %v1466 = vld [vmem:[%s14] sm:$0xf]
    %v1468 = vlaneseq
    %v1469 = vshrl.u32 %v1468, 7
    %v1470 = vsub.s32 0, %v1469
    %v1471 = vrot.slane %v1466, %v1470
    %v1472 = vlaneseq
    %v1473 = vshrl.u32 %v1472, 7
    %v1474 = vsub.s32 1, %v1473
    %v1475 = vrot.slane %v1466, %v1474
    %v1476 = vlaneseq
    %v1477 = vshrl.u32 %v1476, 7
    %v1478 = vsub.s32 2, %v1477
    %v1479 = vrot.slane %v1466, %v1478
    %v1480 = vlaneseq
    %v1481 = vshrl.u32 %v1480, 7
    %v1482 = vsub.s32 3, %v1481
    %v1483 = vrot.slane %v1466, %v1482
    %v1496 = vunpack.c.l.b16 %v1458
    %v1497 = vunpack.c.h.b16 %v1458
    %v1498 = vunpack.c.l.b16 %v1459
    %v1499 = vunpack.c.h.b16 %v1459
    %v1500 = vunpack.c.l.b16 %v1460
    %v1501 = vunpack.c.h.b16 %v1460
    %v1502 = vunpack.c.l.b16 %v1461
    %v1503 = vunpack.c.h.b16 %v1461
    %v1504 = vunpack.c.l.b16 %v1462
    %v1505 = vunpack.c.h.b16 %v1462
    %v1506 = vunpack.c.l.b16 %v1463
    %v1507 = vunpack.c.h.b16 %v1463
    %v1508 = vunpack.c.l.b16 %v1464
    %v1509 = vunpack.c.h.b16 %v1464
    %v1510 = vunpack.c.l.b16 %v1465
    %v1511 = vunpack.c.h.b16 %v1465
    %v1512 = vpack.c.b16 %v1500, %v1496
    %v1513 = vpack.c.b16 %v1501, %v1497
    %v1514 = vpack.c.b16 %v1502, %v1498
    %v1515 = vpack.c.b16 %v1503, %v1499
    %v1516 = vpack.c.b16 %v1508, %v1504
    %v1517 = vpack.c.b16 %v1509, %v1505
    %v1518 = vpack.c.b16 %v1510, %v1506
    %v1519 = vpack.c.b16 %v1511, %v1507
    %v1529 = vsel %vm94, %v1456, 0
    %v1532 = vsel %vm94, %v1457, 0
    %1534 = vmatprep.subr.bf16.mxu0 %v1513
    %1535 = vmatpush1.bf16.msra.mxu0 %v1512
    %1536 = vmatprep.subr.bf16.mxu0 %v1517
    %1537 = vmatpush1.bf16.msra.mxu0 %v1516
    %1538 = vmatprep.subr.bf16.mxu0 0
    %1539 = vmatpush1.bf16.msra.mxu0 0
    %1540 = vmatprep.subr.bf16.mxu0 0
    %1541 = vmatpush1.bf16.msra.mxu0 0
    %1542 = vmatprep.subr.bf16.mxu0 0
    %1543 = vmatpush1.bf16.msra.mxu0 0
    %1544 = vmatprep.subr.bf16.mxu0 0
    %1545 = vmatpush1.bf16.msra.mxu0 0
    %1546 = vmatprep.subr.bf16.mxu0 0
    %1547 = vmatpush1.bf16.msra.mxu0 0
    %1548 = vmatprep.subr.bf16.mxu0 0
    %1549 = vmatpush1.bf16.msra.mxu0 0
    %1550 = vmatprep.subr.bf16.mxu0 0
    %1551 = vmatpush1.bf16.msra.mxu0 0
    %1552 = vmatprep.subr.bf16.mxu0 0
    %1553 = vmatpush1.bf16.msra.mxu0 0
    %1554 = vmatprep.subr.bf16.mxu0 0
    %1555 = vmatpush1.bf16.msra.mxu0 0
    %1556 = vmatprep.subr.bf16.mxu0 0
    %1557 = vmatpush1.bf16.msra.mxu0 0
    %1558 = vmatprep.subr.bf16.mxu0 0
    %1559 = vmatpush1.bf16.msra.mxu0 0
    %1560 = vmatprep.subr.bf16.mxu0 0
    %1561 = vmatpush1.bf16.msra.mxu0 0
    %1562 = vmatprep.subr.bf16.mxu0 0
    %1563 = vmatpush1.bf16.msra.mxu0 0
    %1564 = vmatprep.subr.bf16.mxu0 0
    %1565 = vmatpush1.bf16.msra.mxu0 0
    %1566 = vmatprep.mubr.bf16.mxu0 0
    %1567 = vmatmul.mubr.bf16.gmra.mrb[0].mxu0 %v1529
    %v1568 = vpop.f32.mrb[0].mxu0
    %v1569 = vadd.f32 %v1471, %v1568
    %v1570 = vpop.f32.mrb[0].mxu0
    %v1571 = vadd.f32 %v1475, %v1570
    %v1572 = vpop.f32.mrb[0].mxu0
    %v1573 = vadd.f32 %v1471, %v1572
    %v1574 = vpop.f32.mrb[0].mxu0
    %v1575 = vadd.f32 %v1475, %v1574
    %1576 = vmatprep.mubr.bf16.mxu0 0
    %1577 = vmatmul.mubr.bf16.gmra.mrb[0].mxu0 %v1532
    %v1578 = vpop.f32.mrb[0].mxu0
    %v1579 = vadd.f32 %v1471, %v1578
    %v1580 = vpop.f32.mrb[0].mxu0
    %v1581 = vadd.f32 %v1475, %v1580
    %v1582 = vpop.f32.mrb[0].mxu0
    %v1583 = vadd.f32 %v1471, %v1582
    %v1584 = vpop.f32.mrb[0].mxu0
    %v1585 = vadd.f32 %v1475, %v1584
    %1586 = vdwg.mxu0
    %1587 = vmatprep.subr.bf16.mxu0 %v1515
    %1588 = vmatpush1.bf16.msra.mxu0 %v1514
    %1589 = vmatprep.subr.bf16.mxu0 %v1519
    %1590 = vmatpush1.bf16.msra.mxu0 %v1518
    %1591 = vmatprep.subr.bf16.mxu0 0
    %1592 = vmatpush1.bf16.msra.mxu0 0
    %1593 = vmatprep.subr.bf16.mxu0 0
    %1594 = vmatpush1.bf16.msra.mxu0 0
    %1595 = vmatprep.subr.bf16.mxu0 0
    %1596 = vmatpush1.bf16.msra.mxu0 0
    %1597 = vmatprep.subr.bf16.mxu0 0
    %1598 = vmatpush1.bf16.msra.mxu0 0
    %1599 = vmatprep.subr.bf16.mxu0 0
    %1600 = vmatpush1.bf16.msra.mxu0 0
    %1601 = vmatprep.subr.bf16.mxu0 0
    %1602 = vmatpush1.bf16.msra.mxu0 0
    %1603 = vmatprep.subr.bf16.mxu0 0
    %1604 = vmatpush1.bf16.msra.mxu0 0
    %1605 = vmatprep.subr.bf16.mxu0 0
    %1606 = vmatpush1.bf16.msra.mxu0 0
    %1607 = vmatprep.subr.bf16.mxu0 0
    %1608 = vmatpush1.bf16.msra.mxu0 0
    %1609 = vmatprep.subr.bf16.mxu0 0
    %1610 = vmatpush1.bf16.msra.mxu0 0
    %1611 = vmatprep.subr.bf16.mxu0 0
    %1612 = vmatpush1.bf16.msra.mxu0 0
    %1613 = vmatprep.subr.bf16.mxu0 0
    %1614 = vmatpush1.bf16.msra.mxu0 0
    %1615 = vmatprep.subr.bf16.mxu0 0
    %1616 = vmatpush1.bf16.msra.mxu0 0
    %1617 = vmatprep.subr.bf16.mxu0 0
    %1618 = vmatpush1.bf16.msra.mxu0 0
    %1619 = vmatprep.mubr.bf16.mxu0 0
    %1620 = vmatmul.mubr.bf16.gmra.mrb[0].mxu0 %v1529
    %v1621 = vpop.f32.mrb[0].mxu0
    %v1622 = vadd.f32 %v1479, %v1621
    %v1623 = vpop.f32.mrb[0].mxu0
    %v1624 = vadd.f32 %v1483, %v1623
    %v1625 = vpop.f32.mrb[0].mxu0
    %v1626 = vadd.f32 %v1479, %v1625
    %v1627 = vpop.f32.mrb[0].mxu0
    %v1628 = vadd.f32 %v1483, %v1627
    %1629 = vmatprep.mubr.bf16.mxu0 0
    %1630 = vmatmul.mubr.bf16.gmra.mrb[0].mxu0 %v1532
    %v1631 = vpop.f32.mrb[0].mxu0
    %v1632 = vadd.f32 %v1479, %v1631
    %v1633 = vpop.f32.mrb[0].mxu0
    %v1634 = vadd.f32 %v1483, %v1633
    %v1635 = vpop.f32.mrb[0].mxu0
    %v1636 = vadd.f32 %v1479, %v1635
    %v1637 = vpop.f32.mrb[0].mxu0
    %v1638 = vadd.f32 %v1483, %v1637
    %1639 = vdwg.mxu0
    %v1640 = vmax.f32 %v1569, 0.0
    %v1641 = vmax.f32 %v1571, 0.0
    %v1642 = vmax.f32 %v1622, 0.0
    %v1643 = vmax.f32 %v1624, 0.0
    %v1644 = vmax.f32 %v1573, 0.0
    %v1645 = vmax.f32 %v1575, 0.0
    %v1646 = vmax.f32 %v1626, 0.0
    %v1647 = vmax.f32 %v1628, 0.0
    %v1648 = vmax.f32 %v1579, 0.0
    %v1649 = vmax.f32 %v1581, 0.0
    %v1650 = vmax.f32 %v1632, 0.0
    %v1651 = vmax.f32 %v1634, 0.0
    %v1652 = vmax.f32 %v1583, 0.0
    %v1653 = vmax.f32 %v1585, 0.0
    %v1654 = vmax.f32 %v1636, 0.0
    %v1655 = vmax.f32 %v1638, 0.0
    %v1656 = vpack.c.bf16 %v1644, %v1640
    %v1657 = vpack.c.bf16 %v1645, %v1641
    %v1658 = vpack.c.bf16 %v1646, %v1642
    %v1659 = vpack.c.bf16 %v1647, %v1643
    %v1660 = vpack.c.bf16 %v1652, %v1648
    %v1661 = vpack.c.bf16 %v1653, %v1649
    %v1662 = vpack.c.bf16 %v1654, %v1650
    %v1663 = vpack.c.bf16 %v1655, %v1651
    %v1664 = vld [vmem:[%s15] sm:$0xf]
    %v1665 = vld [vmem:[%s15 + $0x4] sm:$0xf]
    %v1666 = vld [vmem:[%s15 + $0x8] sm:$0xf]
    %v1667 = vld [vmem:[%s15 + $0xc] sm:$0xf]
    %v1668 = vld [vmem:[%s15 + $0x10] sm:$0xf]
    %v1669 = vld [vmem:[%s15 + $0x14] sm:$0xf]
    %v1670 = vld [vmem:[%s15 + $0x18] sm:$0xf]
    %v1671 = vld [vmem:[%s15 + $0x1c] sm:$0xf]
    %v1672 = vld [vmem:[%s15 + $0x20] sm:$0xf]
    %v1673 = vld [vmem:[%s15 + $0x24] sm:$0xf]
    %v1674 = vld [vmem:[%s15 + $0x28] sm:$0xf]
    %v1675 = vld [vmem:[%s15 + $0x2c] sm:$0xf]
    %v1676 = vld [vmem:[%s15 + $0x30] sm:$0xf]
    %v1677 = vld [vmem:[%s15 + $0x34] sm:$0xf]
    %v1678 = vld [vmem:[%s15 + $0x38] sm:$0xf]
    %v1679 = vld [vmem:[%s15 + $0x3c] sm:$0xf]
    %v1680 = vld [vmem:[%s15 + $0x40] sm:$0xf]
    %v1681 = vld [vmem:[%s15 + $0x44] sm:$0xf]
    %v1682 = vld [vmem:[%s15 + $0x48] sm:$0xf]
    %v1683 = vld [vmem:[%s15 + $0x4c] sm:$0xf]
    %v1684 = vld [vmem:[%s15 + $0x50] sm:$0xf]
    %v1685 = vld [vmem:[%s15 + $0x54] sm:$0xf]
    %v1686 = vld [vmem:[%s15 + $0x58] sm:$0xf]
    %v1687 = vld [vmem:[%s15 + $0x5c] sm:$0xf]
    %v1688 = vld [vmem:[%s15 + $0x60] sm:$0xf]
    %v1689 = vld [vmem:[%s15 + $0x64] sm:$0xf]
    %v1690 = vld [vmem:[%s15 + $0x68] sm:$0xf]
    %v1691 = vld [vmem:[%s15 + $0x6c] sm:$0xf]
    %v1692 = vld [vmem:[%s15 + $0x70] sm:$0xf]
    %v1693 = vld [vmem:[%s15 + $0x74] sm:$0xf]
    %v1694 = vld [vmem:[%s15 + $0x78] sm:$0xf]
    %v1695 = vld [vmem:[%s15 + $0x7c] sm:$0xf]
    %v1696 = vld [vmem:[%s15 + $0x80] sm:$0xf]
    %v1697 = vld [vmem:[%s15 + $0x84] sm:$0xf]
    %v1698 = vld [vmem:[%s15 + $0x88] sm:$0xf]
    %v1699 = vld [vmem:[%s15 + $0x8c] sm:$0xf]
    %v1700 = vld [vmem:[%s15 + $0x90] sm:$0xf]
    %v1701 = vld [vmem:[%s15 + $0x94] sm:$0xf]
    %v1702 = vld [vmem:[%s15 + $0x98] sm:$0xf]
    %v1703 = vld [vmem:[%s15 + $0x9c] sm:$0xf]
    %v1704 = vld [vmem:[%s15 + $0xa0] sm:$0xf]
    %v1705 = vld [vmem:[%s15 + $0xa4] sm:$0xf]
    %v1706 = vld [vmem:[%s15 + $0xa8] sm:$0xf]
    %v1707 = vld [vmem:[%s15 + $0xac] sm:$0xf]
    %v1708 = vld [vmem:[%s15 + $0xb0] sm:$0xf]
    %v1709 = vld [vmem:[%s15 + $0xb4] sm:$0xf]
    %v1710 = vld [vmem:[%s15 + $0xb8] sm:$0xf]
    %v1711 = vld [vmem:[%s15 + $0xbc] sm:$0xf]
    %v1712 = vld [vmem:[%s15 + $0xc0] sm:$0xf]
    %v1713 = vld [vmem:[%s15 + $0xc4] sm:$0xf]
    %v1714 = vld [vmem:[%s15 + $0xc8] sm:$0xf]
    %v1715 = vld [vmem:[%s15 + $0xcc] sm:$0xf]
    %v1716 = vld [vmem:[%s15 + $0xd0] sm:$0xf]
    %v1717 = vld [vmem:[%s15 + $0xd4] sm:$0xf]
    %v1718 = vld [vmem:[%s15 + $0xd8] sm:$0xf]
    %v1719 = vld [vmem:[%s15 + $0xdc] sm:$0xf]
    %v1720 = vld [vmem:[%s15 + $0xe0] sm:$0xf]
    %v1721 = vld [vmem:[%s15 + $0xe4] sm:$0xf]
    %v1722 = vld [vmem:[%s15 + $0xe8] sm:$0xf]
    %v1723 = vld [vmem:[%s15 + $0xec] sm:$0xf]
    %v1724 = vld [vmem:[%s15 + $0xf0] sm:$0xf]
    %v1725 = vld [vmem:[%s15 + $0xf4] sm:$0xf]
    %v1726 = vld [vmem:[%s15 + $0xf8] sm:$0xf]
    %v1727 = vld [vmem:[%s15 + $0xfc] sm:$0xf]
    %v1728 = vld [vmem:[%s16] sm:$0x1]
    %v1730 = vlaneseq
    %v1731 = vshrl.u32 %v1730, 7
    %v1732 = vsub.s32 0, %v1731
    %v1733 = vrot.slane %v1728, %v1732
    %v1799 = vunpack.c.l.b16 %v1664
    %v1800 = vunpack.c.l.b16 %v1665
    %v1801 = vunpack.c.l.b16 %v1666
    %v1802 = vunpack.c.l.b16 %v1667
    %v1803 = vunpack.c.l.b16 %v1668
    %v1804 = vunpack.c.l.b16 %v1669
    %v1805 = vunpack.c.l.b16 %v1670
    %v1806 = vunpack.c.l.b16 %v1671
    %v1807 = vunpack.c.l.b16 %v1672
    %v1808 = vunpack.c.l.b16 %v1673
    %v1809 = vunpack.c.l.b16 %v1674
    %v1810 = vunpack.c.l.b16 %v1675
    %v1811 = vunpack.c.l.b16 %v1676
    %v1812 = vunpack.c.l.b16 %v1677
    %v1813 = vunpack.c.l.b16 %v1678
    %v1814 = vunpack.c.l.b16 %v1679
    %v1815 = vunpack.c.l.b16 %v1680
    %v1816 = vunpack.c.l.b16 %v1681
    %v1817 = vunpack.c.l.b16 %v1682
    %v1818 = vunpack.c.l.b16 %v1683
    %v1819 = vunpack.c.l.b16 %v1684
    %v1820 = vunpack.c.l.b16 %v1685
    %v1821 = vunpack.c.l.b16 %v1686
    %v1822 = vunpack.c.l.b16 %v1687
    %v1823 = vunpack.c.l.b16 %v1688
    %v1824 = vunpack.c.l.b16 %v1689
    %v1825 = vunpack.c.l.b16 %v1690
    %v1826 = vunpack.c.l.b16 %v1691
    %v1827 = vunpack.c.l.b16 %v1692
    %v1828 = vunpack.c.l.b16 %v1693
    %v1829 = vunpack.c.l.b16 %v1694
    %v1830 = vunpack.c.l.b16 %v1695
    %v1831 = vunpack.c.l.b16 %v1696
    %v1832 = vunpack.c.l.b16 %v1697
    %v1833 = vunpack.c.l.b16 %v1698
    %v1834 = vunpack.c.l.b16 %v1699
    %v1835 = vunpack.c.l.b16 %v1700
    %v1836 = vunpack.c.l.b16 %v1701
    %v1837 = vunpack.c.l.b16 %v1702
    %v1838 = vunpack.c.l.b16 %v1703
    %v1839 = vunpack.c.l.b16 %v1704
    %v1840 = vunpack.c.l.b16 %v1705
    %v1841 = vunpack.c.l.b16 %v1706
    %v1842 = vunpack.c.l.b16 %v1707
    %v1843 = vunpack.c.l.b16 %v1708
    %v1844 = vunpack.c.l.b16 %v1709
    %v1845 = vunpack.c.l.b16 %v1710
    %v1846 = vunpack.c.l.b16 %v1711
    %v1847 = vunpack.c.l.b16 %v1712
    %v1848 = vunpack.c.l.b16 %v1713
    %v1849 = vunpack.c.l.b16 %v1714
    %v1850 = vunpack.c.l.b16 %v1715
    %v1851 = vunpack.c.l.b16 %v1716
    %v1852 = vunpack.c.l.b16 %v1717
    %v1853 = vunpack.c.l.b16 %v1718
    %v1854 = vunpack.c.l.b16 %v1719
    %v1855 = vunpack.c.l.b16 %v1720
    %v1856 = vunpack.c.l.b16 %v1721
    %v1857 = vunpack.c.l.b16 %v1722
    %v1858 = vunpack.c.l.b16 %v1723
    %v1859 = vunpack.c.l.b16 %v1724
    %v1860 = vunpack.c.l.b16 %v1725
    %v1861 = vunpack.c.l.b16 %v1726
    %v1862 = vunpack.c.l.b16 %v1727
    %v1863 = vpack.c.b16 %v1800, %v1799
    %v1864 = vpack.c.b16 %v1802, %v1801
    %v1865 = vpack.c.b16 %v1804, %v1803
    %v1866 = vpack.c.b16 %v1806, %v1805
    %v1867 = vpack.c.b16 %v1808, %v1807
    %v1868 = vpack.c.b16 %v1810, %v1809
    %v1869 = vpack.c.b16 %v1812, %v1811
    %v1870 = vpack.c.b16 %v1814, %v1813
    %v1871 = vpack.c.b16 %v1816, %v1815
    %v1872 = vpack.c.b16 %v1818, %v1817
    %v1873 = vpack.c.b16 %v1820, %v1819
    %v1874 = vpack.c.b16 %v1822, %v1821
    %v1875 = vpack.c.b16 %v1824, %v1823
    %v1876 = vpack.c.b16 %v1826, %v1825
    %v1877 = vpack.c.b16 %v1828, %v1827
    %v1878 = vpack.c.b16 %v1830, %v1829
    %v1879 = vpack.c.b16 %v1832, %v1831
    %v1880 = vpack.c.b16 %v1834, %v1833
    %v1881 = vpack.c.b16 %v1836, %v1835
    %v1882 = vpack.c.b16 %v1838, %v1837
    %v1883 = vpack.c.b16 %v1840, %v1839
    %v1884 = vpack.c.b16 %v1842, %v1841
    %v1885 = vpack.c.b16 %v1844, %v1843
    %v1886 = vpack.c.b16 %v1846, %v1845
    %v1887 = vpack.c.b16 %v1848, %v1847
    %v1888 = vpack.c.b16 %v1850, %v1849
    %v1889 = vpack.c.b16 %v1852, %v1851
    %v1890 = vpack.c.b16 %v1854, %v1853
    %v1891 = vpack.c.b16 %v1856, %v1855
    %v1892 = vpack.c.b16 %v1858, %v1857
    %v1893 = vpack.c.b16 %v1860, %v1859
    %v1894 = vpack.c.b16 %v1862, %v1861
    %1927 = vmatprep.subr.bf16.mxu0 0
    %1928 = vmatpush1.bf16.msra.mxu0 %v1863
    %1929 = vmatprep.subr.bf16.mxu0 0
    %1930 = vmatpush1.bf16.msra.mxu0 %v1864
    %1931 = vmatprep.subr.bf16.mxu0 0
    %1932 = vmatpush1.bf16.msra.mxu0 %v1865
    %1933 = vmatprep.subr.bf16.mxu0 0
    %1934 = vmatpush1.bf16.msra.mxu0 %v1866
    %1935 = vmatprep.subr.bf16.mxu0 0
    %1936 = vmatpush1.bf16.msra.mxu0 %v1867
    %1937 = vmatprep.subr.bf16.mxu0 0
    %1938 = vmatpush1.bf16.msra.mxu0 %v1868
    %1939 = vmatprep.subr.bf16.mxu0 0
    %1940 = vmatpush1.bf16.msra.mxu0 %v1869
    %1941 = vmatprep.subr.bf16.mxu0 0
    %1942 = vmatpush1.bf16.msra.mxu0 %v1870
    %1943 = vmatprep.subr.bf16.mxu0 0
    %1944 = vmatpush1.bf16.msra.mxu0 %v1871
    %1945 = vmatprep.subr.bf16.mxu0 0
    %1946 = vmatpush1.bf16.msra.mxu0 %v1872
    %1947 = vmatprep.subr.bf16.mxu0 0
    %1948 = vmatpush1.bf16.msra.mxu0 %v1873
    %1949 = vmatprep.subr.bf16.mxu0 0
    %1950 = vmatpush1.bf16.msra.mxu0 %v1874
    %1951 = vmatprep.subr.bf16.mxu0 0
    %1952 = vmatpush1.bf16.msra.mxu0 %v1875
    %1953 = vmatprep.subr.bf16.mxu0 0
    %1954 = vmatpush1.bf16.msra.mxu0 %v1876
    %1955 = vmatprep.subr.bf16.mxu0 0
    %1956 = vmatpush1.bf16.msra.mxu0 %v1877
    %1957 = vmatprep.subr.bf16.mxu0 0
    %1958 = vmatpush1.bf16.msra.mxu0 %v1878
    %1959 = vmatprep.mubr.bf16.mxu0 %v1657
    %1960 = vmatmul.mubr.bf16.gmra.mrb[0].mxu0 %v1656
    %v1961 = vpop.f32.mrb[0].mxu0
    %v1962 = vadd.f32 %v1733, %v1961
    %v1963 = vpop.f32.mrb[0].mxu0
    %v1964 = vpop.f32.mrb[0].mxu0
    %v1965 = vadd.f32 %v1733, %v1964
    %v1966 = vpop.f32.mrb[0].mxu0
    %1967 = vmatprep.mubr.bf16.mxu0 %v1661
    %1968 = vmatmul.mubr.bf16.gmra.mrb[0].mxu0 %v1660
    %v1969 = vpop.f32.mrb[0].mxu0
    %v1970 = vadd.f32 %v1733, %v1969
    %v1971 = vpop.f32.mrb[0].mxu0
    %v1972 = vpop.f32.mrb[0].mxu0
    %v1973 = vadd.f32 %v1733, %v1972
    %v1974 = vpop.f32.mrb[0].mxu0
    %1975 = vdwg.mxu0
    %1976 = vmatprep.subr.bf16.mxu0 0
    %1977 = vmatpush1.bf16.msra.mxu0 %v1879
    %1978 = vmatprep.subr.bf16.mxu0 0
    %1979 = vmatpush1.bf16.msra.mxu0 %v1880
    %1980 = vmatprep.subr.bf16.mxu0 0
    %1981 = vmatpush1.bf16.msra.mxu0 %v1881
    %1982 = vmatprep.subr.bf16.mxu0 0
    %1983 = vmatpush1.bf16.msra.mxu0 %v1882
    %1984 = vmatprep.subr.bf16.mxu0 0
    %1985 = vmatpush1.bf16.msra.mxu0 %v1883
    %1986 = vmatprep.subr.bf16.mxu0 0
    %1987 = vmatpush1.bf16.msra.mxu0 %v1884
    %1988 = vmatprep.subr.bf16.mxu0 0
    %1989 = vmatpush1.bf16.msra.mxu0 %v1885
    %1990 = vmatprep.subr.bf16.mxu0 0
    %1991 = vmatpush1.bf16.msra.mxu0 %v1886
    %1992 = vmatprep.subr.bf16.mxu0 0
    %1993 = vmatpush1.bf16.msra.mxu0 %v1887
    %1994 = vmatprep.subr.bf16.mxu0 0
    %1995 = vmatpush1.bf16.msra.mxu0 %v1888
    %1996 = vmatprep.subr.bf16.mxu0 0
    %1997 = vmatpush1.bf16.msra.mxu0 %v1889
    %1998 = vmatprep.subr.bf16.mxu0 0
    %1999 = vmatpush1.bf16.msra.mxu0 %v1890
    %2000 = vmatprep.subr.bf16.mxu0 0
    %2001 = vmatpush1.bf16.msra.mxu0 %v1891
    %2002 = vmatprep.subr.bf16.mxu0 0
    %2003 = vmatpush1.bf16.msra.mxu0 %v1892
    %2004 = vmatprep.subr.bf16.mxu0 0
    %2005 = vmatpush1.bf16.msra.mxu0 %v1893
    %2006 = vmatprep.subr.bf16.mxu0 0
    %2007 = vmatpush1.bf16.msra.mxu0 %v1894
    %2008 = vmatprep.mubr.bf16.mxu0 %v1659
    %2009 = vmatmul.mubr.bf16.gmra.mrb[0].mxu0 %v1658
    %v2010 = vpop.f32.mrb[0].mxu0
    %v2011 = vadd.f32 %v1962, %v2010
    %v2012 = vpop.f32.mrb[0].mxu0
    %v2013 = vpop.f32.mrb[0].mxu0
    %v2014 = vadd.f32 %v1965, %v2013
    %v2015 = vpop.f32.mrb[0].mxu0
    %2016 = vmatprep.mubr.bf16.mxu0 %v1663
    %2017 = vmatmul.mubr.bf16.gmra.mrb[0].mxu0 %v1662
    %v2018 = vpop.f32.mrb[0].mxu0
    %v2019 = vadd.f32 %v1970, %v2018
    %v2020 = vpop.f32.mrb[0].mxu0
    %v2021 = vpop.f32.mrb[0].mxu0
    %v2022 = vadd.f32 %v1973, %v2021
    %v2023 = vpop.f32.mrb[0].mxu0
    %2024 = vdwg.mxu0
    %v2025 = vadd.f32 %v1452, %v2011
    %v2026 = vadd.f32 %v1453, %v2014
    %v2027 = vadd.f32 %v1454, %v2019
    %v2028 = vadd.f32 %v1455, %v2022
    %v2029 = vsel %vm94, %v2025, 0.0
    %2030 = vadd.xlane.f32.xlu0 %v2029
    %v2031 = vpop.xlane.xlu0 %2030
    %v2032 = vsel %vm94, %v2026, 0.0
    %2033 = vadd.xlane.f32.xlu0 %v2032
    %v2034 = vpop.xlane.xlu0 %2033
    %v2035 = vsel %vm94, %v2027, 0.0
    %2036 = vadd.xlane.f32.xlu0 %v2035
    %v2037 = vpop.xlane.xlu0 %2036
    %v2038 = vsel %vm94, %v2028, 0.0
    %2039 = vadd.xlane.f32.xlu0 %v2038
    %v2040 = vpop.xlane.xlu0 %2039
    %v2041 = vmul.f32 %v2031, %v1393
    %v2042 = vmul.f32 %v2034, %v1393
    %v2043 = vmul.f32 %v2037, %v1393
    %v2044 = vmul.f32 %v2040, %v1393
    %v2045 = vsub.f32 %v2025, %v2041
    %v2046 = vsub.f32 %v2026, %v2042
    %v2047 = vsub.f32 %v2027, %v2043
    %v2048 = vsub.f32 %v2028, %v2044
    %v2049 = vmul.f32 %v2045, %v2045
    %v2050 = vmul.f32 %v2046, %v2046
    %v2051 = vmul.f32 %v2047, %v2047
    %v2052 = vmul.f32 %v2048, %v2048
    %v2053 = vsel %vm94, %v2049, 0.0
    %2054 = vadd.xlane.f32.xlu0 %v2053
    %v2055 = vpop.xlane.xlu0 %2054
    %v2056 = vsel %vm94, %v2050, 0.0
    %2057 = vadd.xlane.f32.xlu0 %v2056
    %v2058 = vpop.xlane.xlu0 %2057
    %v2059 = vsel %vm94, %v2051, 0.0
    %2060 = vadd.xlane.f32.xlu0 %v2059
    %v2061 = vpop.xlane.xlu0 %2060
    %v2062 = vsel %vm94, %v2052, 0.0
    %2063 = vadd.xlane.f32.xlu0 %v2062
    %v2064 = vpop.xlane.xlu0 %2063
    %v2065 = vmul.f32 %v2055, %v1393
    %v2066 = vmul.f32 %v2058, %v1393
    %v2067 = vmul.f32 %v2061, %v1393
    %v2068 = vmul.f32 %v2064, %v1393
    %v2069 = vadd.f32 %v2065, 1e-05
    %v2070 = vadd.f32 %v2066, 1e-05
    %v2071 = vadd.f32 %v2067, 1e-05
    %v2072 = vadd.f32 %v2068, 1e-05
    %v2073 = vrsqrt.pop %v2069
    %v2074 = vrsqrt.pop %v2070
    %v2075 = vrsqrt.pop %v2071
    %v2076 = vrsqrt.pop %v2072
    %v2077 = vmul.f32 %v2045, %v2073
    %v2078 = vmul.f32 %v2046, %v2074
    %v2079 = vmul.f32 %v2047, %v2075
    %v2080 = vmul.f32 %v2048, %v2076
    %v2081 = vld [vmem:[%s17] sm:$0x1]
    %v2083 = vlaneseq
    %v2084 = vshrl.u32 %v2083, 7
    %v2085 = vsub.s32 0, %v2084
    %v2086 = vrot.slane %v2081, %v2085
    %v2088 = vmul.f32 %v2077, %v2086
    %v2089 = vmul.f32 %v2078, %v2086
    %v2090 = vmul.f32 %v2079, %v2086
    %v2091 = vmul.f32 %v2080, %v2086
    %v2092 = vld [vmem:[%s18] sm:$0x1]
    %v2094 = vlaneseq
    %v2095 = vshrl.u32 %v2094, 7
    %v2096 = vsub.s32 0, %v2095
    %v2097 = vrot.slane %v2092, %v2096
    %v2099 = vadd.f32 %v2088, %v2097
    %v2100 = vadd.f32 %v2089, %v2097
    %v2101 = vadd.f32 %v2090, %v2097
    %v2102 = vadd.f32 %v2091, %v2097
    %2103 = vst.msk [vmem:[#allocation2] sm:$0xff] %vm94, %v2099
    %2104 = vst.msk [vmem:[#allocation2 + $0x8] sm:$0xff] %vm94, %v2100
    %s2105 = scalar_lea.vmem [#allocation2], 16
    %2106 = vst.msk [vmem:[%s2105] sm:$0xff] %vm94, %v2101
    %2107 = vst.msk [vmem:[%s2105 + $0x8] sm:$0xff] %vm94, %v2102
    // Predicated region
    $region78: #{tpu_custom_call.1} parent=1 // pred_check
      _
    $region79: #{tpu_custom_call.1} parent=1 // pred_check_branch
      %2109 = sbr.rel (0) target = $region81
    $region80: #{tpu_custom_call.1} parent=1 // pred_region
      %s2111 = ssub.s32 512, 512
      %2112 = vsyncadd [#allocation3], %s2111
      %s2113 = sshll.u32 [#allocation2], 4
      %s2114 = int_to_ptr.vmem [resolvable:$true] %s2113
      %2119 = dma.vmem_to_hbm [thread:$0]  %s2114, 512, %s19, [#allocation3], 128, 128, 8
    $region81: #{tpu_custom_call.1} parent=1 // pred_fallthru
      _
    // Predicated region
    $region82: #{tpu_custom_call.1} parent=1 // pred_check
      _
    $region83: #{tpu_custom_call.1} parent=1 // pred_check_branch
      %2121 = sbr.rel (0) target = $region85
    $region84: #{tpu_custom_call.1} parent=1 // pred_region
      %2122 = dma.done [#allocation3], 512
    $region85: #{tpu_custom_call.1} parent=1 // pred_fallthru
      _
    %2123 = vsyncpa [#allocation3], 1

</llo_original>
